<compile_context>
chip_gen: v5e
topology: v5e:2x2
jax: 0.10.0
libtpu: 0.0.40
codegen_flags: <defaults>
</compile_context>

<pallas_src>
import jax
import jax.numpy as jnp
from jax import lax
from jax.experimental import pallas as pl
from jax.experimental.pallas import tpu as pltpu

# ----------------------------- model dims ---------------------------------
D_ESM = 480          # ESM-2 (35M) hidden size implied by peptide_linear's in=480
D_GEN = 340          # genome feature size
D_PEP_OUT = 256      # peptide_linear out
D_G1 = 256           # genome_linear hidden
D_G2 = 128           # genome_linear out
D_CAT = D_PEP_OUT + D_G2   # 384
HIDDEN_FEAT = 256    # head hidden size
VOCAB = 33           # ESM vocab size (glue embedding table)
OUT_LANES = 128      # lane-dense padded final output width


def _make_kernel(slab, n_slabs):
    """Build the kernel with a statically known sequence-slab decomposition."""

    def kernel(
        emb_ref,        # (TB, TS, 480)  native dtype (bf16 from the glue backbone)
        mask_ref,       # (TB, TS, 1)    bf16   attention mask, S on sublanes
        inv_den_ref,    # (TB, 1)        f32    1 / sum(mask) per row
        gen_ref,        # (TB, 340)      bf16   genome features
        w_pep_ref, b_pep_ref,            # (480, 256) bf16, (1, 256) f32
        w_g1_ref, b_g1_ref,              # (340, 256) bf16, (1, 256) f32
        w_g2_ref, b_g2_ref,              # (256, 128) bf16, (1, 128) f32
        w_h1p_ref, w_h1g_ref, b_h1_ref,  # (256, 256), (128, 256) bf16, (1, 256) f32
        w_h2_ref, b_h2_ref,              # (256, 256) bf16, (1, 256) f32
        w_h3_ref, b_h3_ref,              # (256, 128) bf16 (col 0 real), (1, 1) f32 SMEM
        out_ref,        # (TB, 128) f32  (column 0 is the prediction)
        acc_ref,        # (TB, 480) f32  scratch: masked-sum accumulator
    ):
        s = pl.program_id(1)

        @pl.when(s == 0)
        def _():
            acc_ref[...] = jnp.zeros_like(acc_ref)

        # ---- pooling == 'mean': chunked masked-sum, f32 accumulation ----
        # Slabs of <=32 sublanes keep the f32 intermediate small; jnp.where
        # (instead of emb * mask) makes any out-of-bounds garbage in the last
        # (ragged) embedding tile harmless since the padded mask is zero there.
        def slab_body(i, carry):
            off = pl.multiple_of(i * slab, slab)
            e = emb_ref[:, pl.ds(off, slab), :]           # (TB, slab, 480)
            m = mask_ref[:, pl.ds(off, slab), :]          # (TB, slab, 1)
            masked = jnp.where(m != 0, e, jnp.zeros_like(e)).astype(jnp.float32)
            acc_ref[...] += jnp.sum(masked, axis=1)
            return carry

        lax.fori_loop(0, n_slabs, slab_body, 0, unroll=True)

        # ---- head epilogue: runs once per batch tile ----
        @pl.when(s == pl.num_programs(1) - 1)
        def _():
            bf, f32 = jnp.bfloat16, jnp.float32
            hidden = acc_ref[...] * inv_den_ref[...]      # (TB, 480) mean-pooled, f32

            # peptide_linear: Linear(480, 256)
            pep = jnp.dot(hidden.astype(bf), w_pep_ref[...],
                          preferred_element_type=f32) + b_pep_ref[...]

            # genome_linear: Linear(340,256) -> ReLU -> Linear(256,128)
            g = jnp.dot(gen_ref[...], w_g1_ref[...],
                        preferred_element_type=f32) + b_g1_ref[...]
            g = jnp.maximum(g, 0.0)
            g = jnp.dot(g.astype(bf), w_g2_ref[...],
                        preferred_element_type=f32) + b_g2_ref[...]

            # concat([pep, g], 1) @ W_h1 as split-weight sum (no in-kernel concat)
            h = (jnp.dot(pep.astype(bf), w_h1p_ref[...], preferred_element_type=f32)
                 + jnp.dot(g.astype(bf), w_h1g_ref[...], preferred_element_type=f32)
                 + b_h1_ref[...])
            h = jnp.maximum(h, 0.0)

            h = jnp.dot(h.astype(bf), w_h2_ref[...],
                        preferred_element_type=f32) + b_h2_ref[...]
            h = jnp.maximum(h, 0.0)

            # final Linear(256, 1) computed lane-dense: weight padded to 128 lanes
            out = jnp.dot(h.astype(bf), w_h3_ref[...],
                          preferred_element_type=f32) + b_h3_ref[0, 0]
            out_ref[...] = out

    return kernel


def _round_up(x, m):
    return ((x + m - 1) // m) * m


def _cdiv(a, b):
    return (a + b - 1) // b


def _pick_config(B, S):
    """Tile sizes & VMEM budget per TPU generation.

    v7x (64 MiB VMEM/TC, 2 TCs): smaller batch tiles, >=2 batch tiles when
    possible so both cores get work.  v5e/v6e (128 MiB, 1 TC): big tiles.
    """
    try:
        vmem_cap = pltpu.get_tpu_info().vmem_capacity_bytes
    except Exception:
        vmem_cap = 64 << 20                       # assume the smallest (v7x)
    small_vmem = vmem_cap < (96 << 20)            # v7x-like
    tb_target = 64 if small_vmem else 128
    ts_target = 256
    vmem_limit = (48 << 20) if small_vmem else (96 << 20)

    # Batch tile: prefer tile == full batch extent (no OOB on the leading dim);
    # on 2-core parts split it in two when that still divides B exactly.
    if B <= tb_target:
        tb = B
        if small_vmem and B >= 16 and (B // 2) % 8 == 0:
            tb = B // 2                            # grid[0] >= 2 -> both v7x cores
    else:
        tb = tb_target                             # ragged tail handled by mask
    grid_b = _cdiv(B, tb)
    b_small = grid_b * tb                          # pad only the small per-row arrays

    # Sequence tile (reduction axis, last grid dim).
    s_pad8 = _round_up(S, 8)
    ts = s_pad8 if s_pad8 <= ts_target else ts_target
    grid_s = _cdiv(S, ts)
    s_pad = grid_s * ts                            # mask only is padded to this

    # In-kernel pooling slab (bounds the f32 intermediate).
    if ts <= 32:
        slab = ts
    elif ts % 32 == 0:
        slab = 32
    elif ts % 16 == 0:
        slab = 16
    else:
        slab = 8
    return tb, ts, slab, grid_b, grid_s, b_small, s_pad, vmem_limit


def llamp_forward(embedding, attention_mask, genome_feat, params):
    """Everything downstream of the ESM backbone in one tiled Pallas kernel."""
    B, S, _ = embedding.shape
    tb, ts, slab, grid_b, grid_s, b_small, s_pad, vmem_limit = _pick_config(B, S)
    n_slabs = ts // slab

    bf, f32 = jnp.bfloat16, jnp.float32

    # The big (B, S, 480) embedding is passed to the kernel AS IS (native dtype,
    # no pad / no cast copy).  Only the tiny per-row tensors below are padded.
    mask_f32 = attention_mask.astype(f32)
    denom = jnp.sum(mask_f32, axis=1, keepdims=True)
    # NOTE: guards against all-zero masks; the PyTorch reference would emit NaN.
    inv_den = 1.0 / jnp.maximum(denom, 1.0)

    mask3 = jnp.pad(attention_mask.astype(bf)[:, :, None],
                    ((0, b_small - B), (0, s_pad - S), (0, 0)))
    inv_den = jnp.pad(inv_den, ((0, b_small - B), (0, 0)))
    gen = jnp.pad(genome_feat.astype(bf), ((0, b_small - B), (0, 0)))

    w_pep = params["w_pep"].astype(bf); b_pep = params["b_pep"].astype(f32)
    w_g1 = params["w_g1"].astype(bf);   b_g1 = params["b_g1"].astype(f32)
    w_g2 = params["w_g2"].astype(bf);   b_g2 = params["b_g2"].astype(f32)
    w_h1p = params["w_h1p"].astype(bf); w_h1g = params["w_h1g"].astype(bf)
    b_h1 = params["b_h1"].astype(f32)
    w_h2 = params["w_h2"].astype(bf);   b_h2 = params["b_h2"].astype(f32)
    # pad the (256, 1) final weight to a lane-dense (256, 128); only column 0 real
    w_h3 = jnp.zeros((HIDDEN_FEAT, OUT_LANES), bf).at[:, 0].set(
        params["w_h3"][:, 0].astype(bf))
    b_h3 = params["b_h3"].astype(f32).reshape(1, 1)

    grid = (grid_b, grid_s)

    def const_spec(shape):
        # weights/biases: constant block index -> fetched once, VMEM-resident.
        # (Single-buffering them via pl.Buffered(1) would save ~1 MiB more on
        #  v7x; skipped here to keep lowering maximally portable.)
        return pl.BlockSpec(shape, lambda b, s, _n=len(shape): (0,) * _n)

    in_specs = [
        pl.BlockSpec((tb, ts, D_ESM), lambda b, s: (b, s, 0)),   # embedding stream
        pl.BlockSpec((tb, ts, 1), lambda b, s: (b, s, 0)),       # mask (S on sublanes)
        pl.BlockSpec((tb, 1), lambda b, s: (b, 0)),              # 1/denom
        pl.BlockSpec((tb, D_GEN), lambda b, s: (b, 0)),          # genome feats (bf16)
        const_spec(w_pep.shape), const_spec(b_pep.shape),
        const_spec(w_g1.shape), const_spec(b_g1.shape),
        const_spec(w_g2.shape), const_spec(b_g2.shape),
        const_spec(w_h1p.shape), const_spec(w_h1g.shape), const_spec(b_h1.shape),
        const_spec(w_h2.shape), const_spec(b_h2.shape),
        const_spec(w_h3.shape),
        pl.BlockSpec(memory_space=pltpu.MemorySpace.SMEM),       # b_h3 scalar
    ]
    out_spec = pl.BlockSpec((tb, OUT_LANES), lambda b, s: (b, 0))

    out = pl.pallas_call(
        _make_kernel(slab, n_slabs),
        out_shape=jax.ShapeDtypeStruct((b_small, OUT_LANES), jnp.float32),
        grid_spec=pltpu.PrefetchScalarGridSpec(
            num_scalar_prefetch=0,
            grid=grid,
            in_specs=in_specs,
            out_specs=out_spec,
            scratch_shapes=[pltpu.VMEM((tb, D_ESM), jnp.float32)],
        ),
        compiler_params=pltpu.CompilerParams(
            dimension_semantics=("parallel", "arbitrary"),
            vmem_limit_bytes=vmem_limit,
        ),
    )(embedding, mask3, inv_den, gen,
      w_pep, b_pep, w_g1, b_g1, w_g2, b_g2,
      w_h1p, w_h1g, b_h1, w_h2, b_h2, w_h3, b_h3)

    return out[:B, 0]   # predict.squeeze()


# ----------------------- deterministic parameter init -----------------------
def init_params(key):
    ks = jax.random.split(key, 16)

    def lin(kw, kb, fan_in, fan_out):
        bound = 1.0 / jnp.sqrt(fan_in)
        w = jax.random.uniform(kw, (fan_in, fan_out), jnp.float32, -bound, bound)
        b = jax.random.uniform(kb, (1, fan_out), jnp.float32, -bound, bound)
        return w, b

    w_pep, b_pep = lin(ks[0], ks[1], D_ESM, D_PEP_OUT)
    w_g1, b_g1 = lin(ks[2], ks[3], D_GEN, D_G1)
    w_g2, b_g2 = lin(ks[4], ks[5], D_G1, D_G2)
    # head layer 1: Linear(384, 256), stored split so the kernel avoids concat
    w_h1, b_h1 = lin(ks[6], ks[7], D_CAT, HIDDEN_FEAT)
    w_h1p, w_h1g = w_h1[:D_PEP_OUT], w_h1[D_PEP_OUT:]
    w_h2, b_h2 = lin(ks[8], ks[9], HIDDEN_FEAT, HIDDEN_FEAT)
    w_h3, b_h3 = lin(ks[10], ks[11], HIDDEN_FEAT, 1)
    # glue: deterministic bf16 embedding table replacing the ESM backbone
    # (backbone emits bf16 directly -> no wrapper cast pass over (B,S,480)).
    emb_table = (0.02 * jax.random.normal(ks[12], (VOCAB, D_ESM), jnp.float32)
                 ).astype(jnp.bfloat16)

    return dict(
        w_pep=w_pep, b_pep=b_pep,
        w_g1=w_g1, b_g1=b_g1,
        w_g2=w_g2, b_g2=b_g2,
        w_h1p=w_h1p, w_h1g=w_h1g, b_h1=b_h1,
        w_h2=w_h2, b_h2=b_h2,
        w_h3=w_h3, b_h3=b_h3,
        emb_table=emb_table,
    )


def reference_forward(embedding, attention_mask, genome_feat, p):
    """Pure-JAX f32 mirror of the PyTorch forward (pooling='mean')."""
    emb = embedding.astype(jnp.float32)
    m = attention_mask.astype(jnp.float32)
    hidden = jnp.sum(emb * m[:, :, None], axis=1) / jnp.sum(m, axis=1, keepdims=True)
    pep = hidden @ p["w_pep"] + p["b_pep"]
    g = jnp.maximum(genome_feat @ p["w_g1"] + p["b_g1"], 0.0) @ p["w_g2"] + p["b_g2"]
    feats = jnp.concatenate([pep, g], axis=1)
    w_h1 = jnp.concatenate([p["w_h1p"], p["w_h1g"]], axis=0)
    h = jnp.maximum(feats @ w_h1 + p["b_h1"], 0.0)
    h = jnp.maximum(h @ p["w_h2"] + p["b_h2"], 0.0)
    return (h @ p["w_h3"] + p["b_h3"])[:, 0]


if __name__ == "__main__":
    key = jax.random.PRNGKey(0)
    params = init_params(key)

    B, S = 2, 8
    k_ids, k_gen = jax.random.split(jax.random.PRNGKey(1), 2)
    input_ids = jax.random.randint(k_ids, (B, S), 0, VOCAB, dtype=jnp.int32)
    attention_mask = jnp.array(
        [[1, 1, 1, 1, 1, 1, 1, 1],
         [1, 1, 1, 1, 1, 0, 0, 0]], dtype=jnp.int32)
    genome_feat = jax.random.normal(k_gen, (B, D_GEN), jnp.float32)

    # TODO(synk): full ESM-2 transformer backbone is not reproducible here;
    # replaced by a deterministic bf16 embedding lookup producing (B, S, 480).
    embedding = params["emb_table"][input_ids]        # (B, S, 480) bf16, plain-JAX glue

    out = llamp_forward(embedding, attention_mask, genome_feat, params)
    out = jax.block_until_ready(out)

    ref = reference_forward(embedding, attention_mask, genome_feat, params)
    assert out.shape == (B,)
    # bf16 weight/activation path -> compare against f32 reference with loose tol
    assert jnp.allclose(out, ref, atol=3e-2, rtol=3e-2), (out, ref)
    print("KERNEL_OK")
</pallas_src>

<mosaic_0001>
module attributes {stable_mosaic.version = 11 : i64} {
  func.func @kernel(%arg0: i32, %arg1: i32, %arg2: memref<2x8x480xbf16, #tpu.memory_space<vmem>>, %arg3: memref<2x8x1xbf16, #tpu.memory_space<vmem>>, %arg4: memref<2x1xf32, #tpu.memory_space<vmem>>, %arg5: memref<2x340xbf16, #tpu.memory_space<vmem>>, %arg6: memref<480x256xbf16, #tpu.memory_space<vmem>>, %arg7: memref<1x256xf32, #tpu.memory_space<vmem>>, %arg8: memref<340x256xbf16, #tpu.memory_space<vmem>>, %arg9: memref<1x256xf32, #tpu.memory_space<vmem>>, %arg10: memref<256x128xbf16, #tpu.memory_space<vmem>>, %arg11: memref<1x128xf32, #tpu.memory_space<vmem>>, %arg12: memref<256x256xbf16, #tpu.memory_space<vmem>>, %arg13: memref<128x256xbf16, #tpu.memory_space<vmem>>, %arg14: memref<1x256xf32, #tpu.memory_space<vmem>>, %arg15: memref<256x256xbf16, #tpu.memory_space<vmem>>, %arg16: memref<1x256xf32, #tpu.memory_space<vmem>>, %arg17: memref<256x128xbf16, #tpu.memory_space<vmem>>, %arg18: memref<1x1xf32, #tpu.memory_space<smem>>, %arg19: memref<2x128xf32, #tpu.memory_space<vmem>>, %arg20: memref<2x480xf32, #tpu.memory_space<vmem>>) attributes {dimension_semantics = [#tpu.dimension_semantics<parallel>, #tpu.dimension_semantics<arbitrary>], iteration_bounds = array<i64: 1, 1>, scalar_prefetch = 0 : i64, scratch_operands = 1 : i64, tpu.core_type = #tpu.core_type<tc>, window_params = [{transform_indices = @transform_0, window_bounds = array<i64: 2, 8, 480>}, {transform_indices = @transform_1, window_bounds = array<i64: 2, 8, 1>}, {transform_indices = @transform_2, window_bounds = array<i64: 2, 1>}, {transform_indices = @transform_3, window_bounds = array<i64: 2, 340>}, {pipeline_mode = #tpu.pipeline_mode<synchronous>, transform_indices = @transform_4, window_bounds = array<i64: 480, 256>}, {pipeline_mode = #tpu.pipeline_mode<synchronous>, transform_indices = @transform_5, window_bounds = array<i64: 1, 256>}, {pipeline_mode = #tpu.pipeline_mode<synchronous>, transform_indices = @transform_6, window_bounds = array<i64: 340, 256>}, {pipeline_mode = #tpu.pipeline_mode<synchronous>, transform_indices = @transform_7, window_bounds = array<i64: 1, 256>}, {pipeline_mode = #tpu.pipeline_mode<synchronous>, transform_indices = @transform_8, window_bounds = array<i64: 256, 128>}, {pipeline_mode = #tpu.pipeline_mode<synchronous>, transform_indices = @transform_9, window_bounds = array<i64: 1, 128>}, {pipeline_mode = #tpu.pipeline_mode<synchronous>, transform_indices = @transform_10, window_bounds = array<i64: 256, 256>}, {pipeline_mode = #tpu.pipeline_mode<synchronous>, transform_indices = @transform_11, window_bounds = array<i64: 128, 256>}, {pipeline_mode = #tpu.pipeline_mode<synchronous>, transform_indices = @transform_12, window_bounds = array<i64: 1, 256>}, {pipeline_mode = #tpu.pipeline_mode<synchronous>, transform_indices = @transform_13, window_bounds = array<i64: 256, 256>}, {pipeline_mode = #tpu.pipeline_mode<synchronous>, transform_indices = @transform_14, window_bounds = array<i64: 1, 256>}, {pipeline_mode = #tpu.pipeline_mode<synchronous>, transform_indices = @transform_15, window_bounds = array<i64: 256, 128>}, {transform_indices = @transform_16, window_bounds = array<i64: 1, 1>}, {transform_indices = @transform_17, window_bounds = array<i64: 2, 128>}]} {
    %c0_i32 = arith.constant 0 : i32
    %0 = arith.cmpi eq, %arg1, %c0_i32 : i32
    %1 = arith.extui %0 : i1 to i32
    %c0_i32_0 = arith.constant 0 : i32
    %2 = arith.cmpi ne, %1, %c0_i32_0 : i32
    scf.if %2 {
      %cst_13 = arith.constant 0.000000e+00 : f32
      %23 = vector.broadcast %cst_13 : f32 to vector<2x480xf32>
      %c0_14 = arith.constant 0 : index
      %c0_15 = arith.constant 0 : index
      %24 = vector.load %arg20[%c0_14, %c0_15] : memref<2x480xf32, #tpu.memory_space<vmem>>, vector<2x480xf32>
      tpu.vector_store %arg20[%c0_14, %c0_15], %23 {strides = array<i32>} : memref<2x480xf32, #tpu.memory_space<vmem>>, vector<2x480xf32>,
    } else {
    }
    %c0_i32_1 = arith.constant 0 : i32
    %c8_i32 = arith.constant 8 : i32
    %3 = arith.muli %c0_i32_1, %c8_i32 : i32
    %4 = tpu.assume_multiple %3, 8 : i32
    %c0 = arith.constant 0 : index
    %5 = arith.index_cast %4 : i32 to index
    %c0_2 = arith.constant 0 : index
    %6 = vector.load %arg2[%c0, %5, %c0_2] : memref<2x8x480xbf16, #tpu.memory_space<vmem>>, vector<2x8x480xbf16>
    %c0_3 = arith.constant 0 : index
    %7 = arith.index_cast %4 : i32 to index
    %c0_4 = arith.constant 0 : index
    %8 = vector.load %arg3[%c0_3, %7, %c0_4] : memref<2x8x1xbf16, #tpu.memory_space<vmem>>, vector<2x8x1xbf16>
    %cst = arith.constant 0.000000e+00 : bf16
    %9 = vector.broadcast %cst : bf16 to vector<2x8x1xbf16>
    %10 = arith.cmpf one, %8, %9 : vector<2x8x1xbf16>
    %cst_5 = arith.constant 0.000000e+00 : bf16
    %11 = vector.broadcast %cst_5 : bf16 to vector<2x8x480xbf16>
    %12 = vector.shape_cast %10 : vector<2x8x1xi1> to vector<2x8x1xi1>
    %13 = vector.broadcast %12 : vector<2x8x1xi1> to vector<2x8x480xi1>
    %14 = arith.select %13, %6, %11 : vector<2x8x480xi1>, vector<2x8x480xbf16>
    %15 = arith.extf %14 : vector<2x8x480xbf16> to vector<2x8x480xf32>
    %c0_6 = arith.constant 0 : index
    %c0_7 = arith.constant 0 : index
    %16 = vector.load %arg20[%c0_6, %c0_7] : memref<2x480xf32, #tpu.memory_space<vmem>>, vector<2x480xf32>
    %cst_8 = arith.constant dense<0.000000e+00> : vector<2x480xf32>
    %17 = vector.multi_reduction <add>, %15, %cst_8 [1] : vector<2x8x480xf32> to vector<2x480xf32>
    %18 = arith.addf %16, %17 : vector<2x480xf32>
    %c0_9 = arith.constant 0 : index
    %c0_10 = arith.constant 0 : index
    %19 = vector.load %arg20[%c0_9, %c0_10] : memref<2x480xf32, #tpu.memory_space<vmem>>, vector<2x480xf32>
    tpu.vector_store %arg20[%c0_9, %c0_10], %18 {strides = array<i32>} : memref<2x480xf32, #tpu.memory_space<vmem>>, vector<2x480xf32>,
    %c1_i32 = arith.constant 1 : i32
    %c0_i32_11 = arith.constant 0 : i32
    %20 = arith.cmpi eq, %arg1, %c0_i32_11 : i32
    %21 = arith.extui %20 : i1 to i32
    %c0_i32_12 = arith.constant 0 : i32
    %22 = arith.cmpi ne, %21, %c0_i32_12 : i32
    scf.if %22 {
      %c0_13 = arith.constant 0 : index
      %c0_14 = arith.constant 0 : index
      %23 = vector.load %arg20[%c0_13, %c0_14] : memref<2x480xf32, #tpu.memory_space<vmem>>, vector<2x480xf32>
      %c0_15 = arith.constant 0 : index
      %c0_16 = arith.constant 0 : index
      %24 = vector.load %arg4[%c0_15, %c0_16] : memref<2x1xf32, #tpu.memory_space<vmem>>, vector<2x1xf32>
      %25 = vector.broadcast %24 : vector<2x1xf32> to vector<2x480xf32>
      %26 = arith.mulf %23, %25 : vector<2x480xf32>
      %27 = arith.truncf %26 : vector<2x480xf32> to vector<2x480xbf16>
      %c0_17 = arith.constant 0 : index
      %c0_18 = arith.constant 0 : index
      %28 = vector.load %arg6[%c0_17, %c0_18] : memref<480x256xbf16, #tpu.memory_space<vmem>>, vector<480x256xbf16>
      %cst_19 = arith.constant dense<0.000000e+00> : vector<2x256xf32>
      %29 = tpu.matmul %27, %28, %cst_19 {dimension_numbers = #tpu.dot_dimension_numbers<[1], [0], [0], [1], [0, 0, 1, 1], [], []>} : vector<2x480xbf16>, vector<480x256xbf16>, vector<2x256xf32> -> vector<2x256xf32>
      %c0_20 = arith.constant 0 : index
      %c0_21 = arith.constant 0 : index
      %30 = vector.load %arg7[%c0_20, %c0_21] : memref<1x256xf32, #tpu.memory_space<vmem>>, vector<1x256xf32>
      %31 = vector.broadcast %30 : vector<1x256xf32> to vector<2x256xf32>
      %32 = arith.addf %29, %31 : vector<2x256xf32>
      %c0_22 = arith.constant 0 : index
      %c0_23 = arith.constant 0 : index
      %33 = vector.load %arg5[%c0_22, %c0_23] : memref<2x340xbf16, #tpu.memory_space<vmem>>, vector<2x340xbf16>
      %c0_24 = arith.constant 0 : index
      %c0_25 = arith.constant 0 : index
      %34 = vector.load %arg8[%c0_24, %c0_25] : memref<340x256xbf16, #tpu.memory_space<vmem>>, vector<340x256xbf16>
      %cst_26 = arith.constant dense<0.000000e+00> : vector<2x256xf32>
      %35 = tpu.matmul %33, %34, %cst_26 {dimension_numbers = #tpu.dot_dimension_numbers<[1], [0], [0], [1], [0, 0, 1, 1], [], []>} : vector<2x340xbf16>, vector<340x256xbf16>, vector<2x256xf32> -> vector<2x256xf32>
      %c0_27 = arith.constant 0 : index
      %c0_28 = arith.constant 0 : index
      %36 = vector.load %arg9[%c0_27, %c0_28] : memref<1x256xf32, #tpu.memory_space<vmem>>, vector<1x256xf32>
      %37 = vector.broadcast %36 : vector<1x256xf32> to vector<2x256xf32>
      %38 = arith.addf %35, %37 : vector<2x256xf32>
      %cst_29 = arith.constant 0.000000e+00 : f32
      %39 = vector.broadcast %cst_29 : f32 to vector<2x256xf32>
      %40 = arith.maximumf %38, %39 : vector<2x256xf32>
      %41 = arith.truncf %40 : vector<2x256xf32> to vector<2x256xbf16>
      %c0_30 = arith.constant 0 : index
      %c0_31 = arith.constant 0 : index
      %42 = vector.load %arg10[%c0_30, %c0_31] : memref<256x128xbf16, #tpu.memory_space<vmem>>, vector<256x128xbf16>
      %cst_32 = arith.constant dense<0.000000e+00> : vector<2x128xf32>
      %43 = tpu.matmul %41, %42, %cst_32 {dimension_numbers = #tpu.dot_dimension_numbers<[1], [0], [0], [1], [0, 0, 1, 1], [], []>} : vector<2x256xbf16>, vector<256x128xbf16>, vector<2x128xf32> -> vector<2x128xf32>
      %c0_33 = arith.constant 0 : index
      %c0_34 = arith.constant 0 : index
      %44 = vector.load %arg11[%c0_33, %c0_34] : memref<1x128xf32, #tpu.memory_space<vmem>>, vector<1x128xf32>
      %45 = vector.broadcast %44 : vector<1x128xf32> to vector<2x128xf32>
      %46 = arith.addf %43, %45 : vector<2x128xf32>
      %47 = arith.truncf %32 : vector<2x256xf32> to vector<2x256xbf16>
      %c0_35 = arith.constant 0 : index
      %c0_36 = arith.constant 0 : index
      %48 = vector.load %arg12[%c0_35, %c0_36] : memref<256x256xbf16, #tpu.memory_space<vmem>>, vector<256x256xbf16>
      %cst_37 = arith.constant dense<0.000000e+00> : vector<2x256xf32>
      %49 = tpu.matmul %47, %48, %cst_37 {dimension_numbers = #tpu.dot_dimension_numbers<[1], [0], [0], [1], [0, 0, 1, 1], [], []>} : vector<2x256xbf16>, vector<256x256xbf16>, vector<2x256xf32> -> vector<2x256xf32>
      %50 = arith.truncf %46 : vector<2x128xf32> to vector<2x128xbf16>
      %c0_38 = arith.constant 0 : index
      %c0_39 = arith.constant 0 : index
      %51 = vector.load %arg13[%c0_38, %c0_39] : memref<128x256xbf16, #tpu.memory_space<vmem>>, vector<128x256xbf16>
      %cst_40 = arith.constant dense<0.000000e+00> : vector<2x256xf32>
      %52 = tpu.matmul %50, %51, %cst_40 {dimension_numbers = #tpu.dot_dimension_numbers<[1], [0], [0], [1], [0, 0, 1, 1], [], []>} : vector<2x128xbf16>, vector<128x256xbf16>, vector<2x256xf32> -> vector<2x256xf32>
      %53 = arith.addf %49, %52 : vector<2x256xf32>
      %c0_41 = arith.constant 0 : index
      %c0_42 = arith.constant 0 : index
      %54 = vector.load %arg14[%c0_41, %c0_42] : memref<1x256xf32, #tpu.memory_space<vmem>>, vector<1x256xf32>
      %55 = vector.broadcast %54 : vector<1x256xf32> to vector<2x256xf32>
      %56 = arith.addf %53, %55 : vector<2x256xf32>
      %cst_43 = arith.constant 0.000000e+00 : f32
      %57 = vector.broadcast %cst_43 : f32 to vector<2x256xf32>
      %58 = arith.maximumf %56, %57 : vector<2x256xf32>
      %59 = arith.truncf %58 : vector<2x256xf32> to vector<2x256xbf16>
      %c0_44 = arith.constant 0 : index
      %c0_45 = arith.constant 0 : index
      %60 = vector.load %arg15[%c0_44, %c0_45] : memref<256x256xbf16, #tpu.memory_space<vmem>>, vector<256x256xbf16>
      %cst_46 = arith.constant dense<0.000000e+00> : vector<2x256xf32>
      %61 = tpu.matmul %59, %60, %cst_46 {dimension_numbers = #tpu.dot_dimension_numbers<[1], [0], [0], [1], [0, 0, 1, 1], [], []>} : vector<2x256xbf16>, vector<256x256xbf16>, vector<2x256xf32> -> vector<2x256xf32>
      %c0_47 = arith.constant 0 : index
      %c0_48 = arith.constant 0 : index
      %62 = vector.load %arg16[%c0_47, %c0_48] : memref<1x256xf32, #tpu.memory_space<vmem>>, vector<1x256xf32>
      %63 = vector.broadcast %62 : vector<1x256xf32> to vector<2x256xf32>
      %64 = arith.addf %61, %63 : vector<2x256xf32>
      %cst_49 = arith.constant 0.000000e+00 : f32
      %65 = vector.broadcast %cst_49 : f32 to vector<2x256xf32>
      %66 = arith.maximumf %64, %65 : vector<2x256xf32>
      %67 = arith.truncf %66 : vector<2x256xf32> to vector<2x256xbf16>
      %c0_50 = arith.constant 0 : index
      %c0_51 = arith.constant 0 : index
      %68 = vector.load %arg17[%c0_50, %c0_51] : memref<256x128xbf16, #tpu.memory_space<vmem>>, vector<256x128xbf16>
      %cst_52 = arith.constant dense<0.000000e+00> : vector<2x128xf32>
      %69 = tpu.matmul %67, %68, %cst_52 {dimension_numbers = #tpu.dot_dimension_numbers<[1], [0], [0], [1], [0, 0, 1, 1], [], []>} : vector<2x256xbf16>, vector<256x128xbf16>, vector<2x128xf32> -> vector<2x128xf32>
      %c0_53 = arith.constant 0 : index
      %c0_54 = arith.constant 0 : index
      %70 = memref.load %arg18[%c0_53, %c0_54] : memref<1x1xf32, #tpu.memory_space<smem>>
      %71 = vector.broadcast %70 : f32 to vector<2x128xf32>
      %72 = arith.addf %69, %71 : vector<2x128xf32>
      %c0_55 = arith.constant 0 : index
      %c0_56 = arith.constant 0 : index
      %73 = vector.load %arg19[%c0_55, %c0_56] : memref<2x128xf32, #tpu.memory_space<vmem>>, vector<2x128xf32>
      tpu.vector_store %arg19[%c0_55, %c0_56], %72 {strides = array<i32>} : memref<2x128xf32, #tpu.memory_space<vmem>>, vector<2x128xf32>,
    } else {
    }
    return
  }
  func.func @transform_0(%arg0: i32, %arg1: i32) -> (i32, i32, i32) {
    %c0_i32 = arith.constant 0 : i32
    %c0_i32_0 = arith.constant 0 : i32
    return %arg0, %arg1, %c0_i32 : i32, i32, i32
  }
  func.func @transform_1(%arg0: i32, %arg1: i32) -> (i32, i32, i32) {
    %c0_i32 = arith.constant 0 : i32
    %c0_i32_0 = arith.constant 0 : i32
    return %arg0, %arg1, %c0_i32 : i32, i32, i32
  }
  func.func @transform_2(%arg0: i32, %arg1: i32) -> (i32, i32) {
    %c0_i32 = arith.constant 0 : i32
    %c0_i32_0 = arith.constant 0 : i32
    return %arg0, %c0_i32 : i32, i32
  }
  func.func @transform_3(%arg0: i32, %arg1: i32) -> (i32, i32) {
    %c0_i32 = arith.constant 0 : i32
    %c0_i32_0 = arith.constant 0 : i32
    return %arg0, %c0_i32 : i32, i32
  }
  func.func @transform_4(%arg0: i32, %arg1: i32) -> (i32, i32) {
    %c0_i32 = arith.constant 0 : i32
    %c0_i32_0 = arith.constant 0 : i32
    %c0_i32_1 = arith.constant 0 : i32
    return %c0_i32, %c0_i32_0 : i32, i32
  }
  func.func @transform_5(%arg0: i32, %arg1: i32) -> (i32, i32) {
    %c0_i32 = arith.constant 0 : i32
    %c0_i32_0 = arith.constant 0 : i32
    %c0_i32_1 = arith.constant 0 : i32
    return %c0_i32, %c0_i32_0 : i32, i32
  }
  func.func @transform_6(%arg0: i32, %arg1: i32) -> (i32, i32) {
    %c0_i32 = arith.constant 0 : i32
    %c0_i32_0 = arith.constant 0 : i32
    %c0_i32_1 = arith.constant 0 : i32
    return %c0_i32, %c0_i32_0 : i32, i32
  }
  func.func @transform_7(%arg0: i32, %arg1: i32) -> (i32, i32) {
    %c0_i32 = arith.constant 0 : i32
    %c0_i32_0 = arith.constant 0 : i32
    %c0_i32_1 = arith.constant 0 : i32
    return %c0_i32, %c0_i32_0 : i32, i32
  }
  func.func @transform_8(%arg0: i32, %arg1: i32) -> (i32, i32) {
    %c0_i32 = arith.constant 0 : i32
    %c0_i32_0 = arith.constant 0 : i32
    %c0_i32_1 = arith.constant 0 : i32
    return %c0_i32, %c0_i32_0 : i32, i32
  }
  func.func @transform_9(%arg0: i32, %arg1: i32) -> (i32, i32) {
    %c0_i32 = arith.constant 0 : i32
    %c0_i32_0 = arith.constant 0 : i32
    %c0_i32_1 = arith.constant 0 : i32
    return %c0_i32, %c0_i32_0 : i32, i32
  }
  func.func @transform_10(%arg0: i32, %arg1: i32) -> (i32, i32) {
    %c0_i32 = arith.constant 0 : i32
    %c0_i32_0 = arith.constant 0 : i32
    %c0_i32_1 = arith.constant 0 : i32
    return %c0_i32, %c0_i32_0 : i32, i32
  }
  func.func @transform_11(%arg0: i32, %arg1: i32) -> (i32, i32) {
    %c0_i32 = arith.constant 0 : i32
    %c0_i32_0 = arith.constant 0 : i32
    %c0_i32_1 = arith.constant 0 : i32
    return %c0_i32, %c0_i32_0 : i32, i32
  }
  func.func @transform_12(%arg0: i32, %arg1: i32) -> (i32, i32) {
    %c0_i32 = arith.constant 0 : i32
    %c0_i32_0 = arith.constant 0 : i32
    %c0_i32_1 = arith.constant 0 : i32
    return %c0_i32, %c0_i32_0 : i32, i32
  }
  func.func @transform_13(%arg0: i32, %arg1: i32) -> (i32, i32) {
    %c0_i32 = arith.constant 0 : i32
    %c0_i32_0 = arith.constant 0 : i32
    %c0_i32_1 = arith.constant 0 : i32
    return %c0_i32, %c0_i32_0 : i32, i32
  }
  func.func @transform_14(%arg0: i32, %arg1: i32) -> (i32, i32) {
    %c0_i32 = arith.constant 0 : i32
    %c0_i32_0 = arith.constant 0 : i32
    %c0_i32_1 = arith.constant 0 : i32
    return %c0_i32, %c0_i32_0 : i32, i32
  }
  func.func @transform_15(%arg0: i32, %arg1: i32) -> (i32, i32) {
    %c0_i32 = arith.constant 0 : i32
    %c0_i32_0 = arith.constant 0 : i32
    %c0_i32_1 = arith.constant 0 : i32
    return %c0_i32, %c0_i32_0 : i32, i32
  }
  func.func @transform_16(%arg0: i32, %arg1: i32) -> (i32, i32) {
    %c0_i32 = arith.constant 0 : i32
    %c0_i32_0 = arith.constant 0 : i32
    %c0_i32_1 = arith.constant 0 : i32
    return %c0_i32, %c0_i32_0 : i32, i32
  }
  func.func @transform_17(%arg0: i32, %arg1: i32) -> (i32, i32) {
    %c0_i32 = arith.constant 0 : i32
    %c0_i32_0 = arith.constant 0 : i32
    return %arg0, %c0_i32 : i32, i32
  }
}

</mosaic_0001>

<llo_original>
// kernel: tpu_custom_call.1
$region0: #{tpu_custom_call.1}
  #allocation0 [shape = 'u32[]', space=smem, size = 0x4, offset = 0x4, fixed_abs, tag = 'smem constant byte address 0x4 - core index']
  #allocation1 [shape = 'u32[72,128]{1,0:T(1,128)}', space=vmem, size = 0x9000, scoped, tag = 'internal scratch']
  #allocation2 [shape = 'f32[2,480]{1,0:T(2,128)}', space=vmem, size = 0x1000, scoped, tag = 'scratch operand']
  #allocation3 [shape = 'f32[1,1]{1,0:T(1,128)S(6)}', space=smem, size = 0x200, scoped, tag = 'scoped memory for tpu_custom_call.1']
  %s0 = inlined_call_operand.hbm [shape: bf16[2,8,480], index: 0, kind: input, shape index: {}]
  %s1 = inlined_call_operand.vmem [shape: bf16[2,8,1], index: 1, kind: input, shape index: {}]
  %s2 = inlined_call_operand.vmem [shape: f32[2,1], index: 2, kind: input, shape index: {}]
  %s3 = inlined_call_operand.vmem [shape: bf16[2,340], index: 3, kind: input, shape index: {}]
  %s4 = inlined_call_operand.hbm [shape: bf16[480,256], index: 4, kind: input, shape index: {}]
  %s5 = inlined_call_operand.vmem [shape: f32[1,256], index: 5, kind: input, shape index: {}]
  %s6 = inlined_call_operand.hbm [shape: bf16[340,256], index: 6, kind: input, shape index: {}]
  %s7 = inlined_call_operand.vmem [shape: f32[1,256], index: 7, kind: input, shape index: {}]
  %s8 = inlined_call_operand.hbm [shape: bf16[256,128], index: 8, kind: input, shape index: {}]
  %s9 = inlined_call_operand.vmem [shape: f32[1,128], index: 9, kind: input, shape index: {}]
  %s10 = inlined_call_operand.hbm [shape: bf16[256,256], index: 10, kind: input, shape index: {}]
  %s11 = inlined_call_operand.hbm [shape: bf16[128,256], index: 11, kind: input, shape index: {}]
  %s12 = inlined_call_operand.vmem [shape: f32[1,256], index: 12, kind: input, shape index: {}]
  %s13 = inlined_call_operand.hbm [shape: bf16[256,256], index: 13, kind: input, shape index: {}]
  %s14 = inlined_call_operand.vmem [shape: f32[1,256], index: 14, kind: input, shape index: {}]
  %s15 = inlined_call_operand.hbm [shape: bf16[256,128], index: 15, kind: input, shape index: {}]
  %s16 = inlined_call_operand.<no memory space> [shape: f32[1,1], index: 16, kind: input, shape index: {}]
  %s17 = inlined_call_operand.hbm [shape: f32[2,128], index: 17, kind: output, shape index: {}]
  %s18 = sld [smem:[#allocation0]]
  $region118: #{tpu_custom_call.1} parent=0
    _
  %s20 = ssub.s32 1, %s18
  %s21 = scalar_select 0, %s20, %s18
  %22 = sst [smem:[#allocation3]] %s16
  $region1: #{tpu_custom_call.1} parent=0
    #allocation4 [shape = 'u8[16384]{0}', space=vmem, size = 0x4000, scoped, tag = 'input window, operand 0, single buffered']
    #allocation5 [shape = 's32[1]{0}', space=sflag, size = 0x4, scoped, tag = 'scoped memory for tpu_custom_call.1']
    #allocation6 [shape = 's32[1]{0}', space=sflag, size = 0x4, scoped, tag = 'scoped memory for tpu_custom_call.1']
    #allocation7 [shape = 'u8[245760]{0}', space=vmem, size = 0x3c000, scoped, tag = 'input window, operand 4, single buffered']
    #allocation8 [shape = 's32[1]{0}', space=sflag, size = 0x4, scoped, tag = 'scoped memory for tpu_custom_call.1']
    #allocation9 [shape = 'u8[176128]{0}', space=vmem, size = 0x2b000, scoped, tag = 'input window, operand 6, single buffered']
    #allocation10 [shape = 'u8[65536]{0}', space=vmem, size = 0x10000, scoped, tag = 'input window, operand 8, single buffered']
    #allocation11 [shape = 's32[1]{0}', space=sflag, size = 0x4, scoped, tag = 'scoped memory for tpu_custom_call.1']
    #allocation12 [shape = 'u8[131072]{0}', space=vmem, size = 0x20000, scoped, tag = 'input window, operand 10, single buffered']
    #allocation13 [shape = 'u8[65536]{0}', space=vmem, size = 0x10000, scoped, tag = 'input window, operand 11, single buffered']
    #allocation14 [shape = 's32[1]{0}', space=sflag, size = 0x4, scoped, tag = 'scoped memory for tpu_custom_call.1']
    #allocation15 [shape = 'u8[131072]{0}', space=vmem, size = 0x20000, scoped, tag = 'input window, operand 13, single buffered']
    #allocation16 [shape = 'u8[65536]{0}', space=vmem, size = 0x10000, scoped, tag = 'input window, operand 15, single buffered']
    #allocation17 [shape = 's32[1]{0}', space=sflag, size = 0x4, scoped, tag = 'scoped memory for tpu_custom_call.1']
    #allocation18 [shape = 'u8[1024]{0}', space=vmem, size = 0x400, scoped, tag = 'output window, operand 0, single buffered']
    %23 = vsyncpa [#allocation5], 0
    %24 = vsyncpa [#allocation8], 0
    %25 = vsyncpa [#allocation11], 0
    %26 = vsyncpa [#allocation14], 0
    %27 = vsyncpa [#allocation17], 0
    %28 = vsyncpa [#allocation6], 0
    // Predicated region
    $region2: #{tpu_custom_call.1} parent=1 // pred_check
      _
    $region3: #{tpu_custom_call.1} parent=1 // pred_check_branch
      %30 = sbr.rel (0) target = $region5
    $region4: #{tpu_custom_call.1} parent=1 // pred_region
      %32 = vsyncadd [#allocation5], 0
      %s33 = sshll.u32 %s0, 4
      %s34 = int_to_ptr.hbm [resolvable:$true] %s33
      %s35 = sshll.u32 [#allocation4], 4
      %s36 = int_to_ptr.vmem [resolvable:$true] %s35
      %41 = dma.hbm_to_vmem [thread:$0]  %s34, 512, %s36, [#allocation5], 256, 256, 16
    $region5: #{tpu_custom_call.1} parent=1 // pred_fallthru
      _
    // Predicated region
    $region6: #{tpu_custom_call.1} parent=1 // pred_check
      _
    $region7: #{tpu_custom_call.1} parent=1 // pred_check_branch
      %43 = sbr.rel (0) target = $region9
    $region8: #{tpu_custom_call.1} parent=1 // pred_region
      _
    $region9: #{tpu_custom_call.1} parent=1 // pred_fallthru
      _
    // Predicated region
    $region10: #{tpu_custom_call.1} parent=1 // pred_check
      _
    $region11: #{tpu_custom_call.1} parent=1 // pred_check_branch
      %45 = sbr.rel (0) target = $region13
    $region12: #{tpu_custom_call.1} parent=1 // pred_region
      _
    $region13: #{tpu_custom_call.1} parent=1 // pred_fallthru
      _
    // Predicated region
    $region14: #{tpu_custom_call.1} parent=1 // pred_check
      _
    $region15: #{tpu_custom_call.1} parent=1 // pred_check_branch
      %47 = sbr.rel (0) target = $region17
    $region16: #{tpu_custom_call.1} parent=1 // pred_region
      _
    $region17: #{tpu_custom_call.1} parent=1 // pred_fallthru
      _
    // Predicated region
    $region18: #{tpu_custom_call.1} parent=1 // pred_check
      _
    $region19: #{tpu_custom_call.1} parent=1 // pred_check_branch
      %49 = sbr.rel (0) target = $region21
    $region20: #{tpu_custom_call.1} parent=1 // pred_region
      %51 = vsyncadd [#allocation8], 0
      %s52 = sshll.u32 %s4, 4
      %s53 = int_to_ptr.hbm [resolvable:$true] %s52
      %s54 = sshll.u32 [#allocation7], 4
      %s55 = int_to_ptr.vmem [resolvable:$true] %s54
      %60 = dma.hbm_to_vmem [thread:$0]  %s53, 7680, %s55, [#allocation8], 128, 128, 8
    $region21: #{tpu_custom_call.1} parent=1 // pred_fallthru
      _
    // Predicated region
    $region22: #{tpu_custom_call.1} parent=1 // pred_check
      _
    $region23: #{tpu_custom_call.1} parent=1 // pred_check_branch
      %62 = sbr.rel (0) target = $region25
    $region24: #{tpu_custom_call.1} parent=1 // pred_region
      _
    $region25: #{tpu_custom_call.1} parent=1 // pred_fallthru
      _
    // Predicated region
    $region26: #{tpu_custom_call.1} parent=1 // pred_check
      _
    $region27: #{tpu_custom_call.1} parent=1 // pred_check_branch
      %64 = sbr.rel (0) target = $region29
    $region28: #{tpu_custom_call.1} parent=1 // pred_region
      %66 = vsyncadd [#allocation8], 0
      %s67 = sshll.u32 %s6, 4
      %s68 = int_to_ptr.hbm [resolvable:$true] %s67
      %s69 = sshll.u32 [#allocation9], 4
      %s70 = int_to_ptr.vmem [resolvable:$true] %s69
      %75 = dma.hbm_to_vmem [thread:$0]  %s68, 5504, %s70, [#allocation8], 128, 128, 8
    $region29: #{tpu_custom_call.1} parent=1 // pred_fallthru
      _
    // Predicated region
    $region30: #{tpu_custom_call.1} parent=1 // pred_check
      _
    $region31: #{tpu_custom_call.1} parent=1 // pred_check_branch
      %77 = sbr.rel (0) target = $region33
    $region32: #{tpu_custom_call.1} parent=1 // pred_region
      _
    $region33: #{tpu_custom_call.1} parent=1 // pred_fallthru
      _
    // Predicated region
    $region34: #{tpu_custom_call.1} parent=1 // pred_check
      _
    $region35: #{tpu_custom_call.1} parent=1 // pred_check_branch
      %79 = sbr.rel (0) target = $region37
    $region36: #{tpu_custom_call.1} parent=1 // pred_region
      %81 = vsyncadd [#allocation11], 0
      %s82 = sshll.u32 %s8, 4
      %s83 = int_to_ptr.hbm [resolvable:$true] %s82
      %s84 = sshll.u32 [#allocation10], 4
      %s85 = int_to_ptr.vmem [resolvable:$true] %s84
      %90 = dma.hbm_to_vmem [thread:$0]  %s83, 2048, %s85, [#allocation11], 64, 64, 4
    $region37: #{tpu_custom_call.1} parent=1 // pred_fallthru
      _
    // Predicated region
    $region38: #{tpu_custom_call.1} parent=1 // pred_check
      _
    $region39: #{tpu_custom_call.1} parent=1 // pred_check_branch
      %92 = sbr.rel (0) target = $region41
    $region40: #{tpu_custom_call.1} parent=1 // pred_region
      _
    $region41: #{tpu_custom_call.1} parent=1 // pred_fallthru
      _
    // Predicated region
    $region42: #{tpu_custom_call.1} parent=1 // pred_check
      _
    $region43: #{tpu_custom_call.1} parent=1 // pred_check_branch
      %94 = sbr.rel (0) target = $region45
    $region44: #{tpu_custom_call.1} parent=1 // pred_region
      %96 = vsyncadd [#allocation11], 0
      %s97 = sshll.u32 %s10, 4
      %s98 = int_to_ptr.hbm [resolvable:$true] %s97
      %s99 = sshll.u32 [#allocation12], 4
      %s100 = int_to_ptr.vmem [resolvable:$true] %s99
      %105 = dma.hbm_to_vmem [thread:$0]  %s98, 4096, %s100, [#allocation11], 128, 128, 8
    $region45: #{tpu_custom_call.1} parent=1 // pred_fallthru
      _
    // Predicated region
    $region46: #{tpu_custom_call.1} parent=1 // pred_check
      _
    $region47: #{tpu_custom_call.1} parent=1 // pred_check_branch
      %107 = sbr.rel (0) target = $region49
    $region48: #{tpu_custom_call.1} parent=1 // pred_region
      %109 = vsyncadd [#allocation14], 0
      %s110 = sshll.u32 %s11, 4
      %s111 = int_to_ptr.hbm [resolvable:$true] %s110
      %s112 = sshll.u32 [#allocation13], 4
      %s113 = int_to_ptr.vmem [resolvable:$true] %s112
      %118 = dma.hbm_to_vmem [thread:$0]  %s111, 2048, %s113, [#allocation14], 128, 128, 8
    $region49: #{tpu_custom_call.1} parent=1 // pred_fallthru
      _
    // Predicated region
    $region50: #{tpu_custom_call.1} parent=1 // pred_check
      _
    $region51: #{tpu_custom_call.1} parent=1 // pred_check_branch
      %120 = sbr.rel (0) target = $region53
    $region52: #{tpu_custom_call.1} parent=1 // pred_region
      _
    $region53: #{tpu_custom_call.1} parent=1 // pred_fallthru
      _
    // Predicated region
    $region54: #{tpu_custom_call.1} parent=1 // pred_check
      _
    $region55: #{tpu_custom_call.1} parent=1 // pred_check_branch
      %122 = sbr.rel (0) target = $region57
    $region56: #{tpu_custom_call.1} parent=1 // pred_region
      %124 = vsyncadd [#allocation14], 0
      %s125 = sshll.u32 %s13, 4
      %s126 = int_to_ptr.hbm [resolvable:$true] %s125
      %s127 = sshll.u32 [#allocation15], 4
      %s128 = int_to_ptr.vmem [resolvable:$true] %s127
      %133 = dma.hbm_to_vmem [thread:$0]  %s126, 4096, %s128, [#allocation14], 128, 128, 8
    $region57: #{tpu_custom_call.1} parent=1 // pred_fallthru
      _
    // Predicated region
    $region58: #{tpu_custom_call.1} parent=1 // pred_check
      _
    $region59: #{tpu_custom_call.1} parent=1 // pred_check_branch
      %135 = sbr.rel (0) target = $region61
    $region60: #{tpu_custom_call.1} parent=1 // pred_region
      _
    $region61: #{tpu_custom_call.1} parent=1 // pred_fallthru
      _
    // Predicated region
    $region62: #{tpu_custom_call.1} parent=1 // pred_check
      _
    $region63: #{tpu_custom_call.1} parent=1 // pred_check_branch
      %137 = sbr.rel (0) target = $region65
    $region64: #{tpu_custom_call.1} parent=1 // pred_region
      %139 = vsyncadd [#allocation17], 0
      %s140 = sshll.u32 %s15, 4
      %s141 = int_to_ptr.hbm [resolvable:$true] %s140
      %s142 = sshll.u32 [#allocation16], 4
      %s143 = int_to_ptr.vmem [resolvable:$true] %s142
      %148 = dma.hbm_to_vmem [thread:$0]  %s141, 2048, %s143, [#allocation17], 64, 64, 4
    $region65: #{tpu_custom_call.1} parent=1 // pred_fallthru
      _
    // Predicated region
    $region66: #{tpu_custom_call.1} parent=1 // pred_check
      _
    $region67: #{tpu_custom_call.1} parent=1 // pred_check_branch
      %150 = sbr.rel (0) target = $region69
    $region68: #{tpu_custom_call.1} parent=1 // pred_region
      _
    $region69: #{tpu_custom_call.1} parent=1 // pred_fallthru
      _
    // Predicated region
    $region70: #{tpu_custom_call.1} parent=1 // pred_check
      _
    $region71: #{tpu_custom_call.1} parent=1 // pred_check_branch
      %152 = sbr.rel (0) target = $region73
    $region72: #{tpu_custom_call.1} parent=1 // pred_region
      %154 = dma.done [#allocation5], 512
    $region73: #{tpu_custom_call.1} parent=1 // pred_fallthru
      _
    // Predicated region
    $region74: #{tpu_custom_call.1} parent=1 // pred_check
      _
    $region75: #{tpu_custom_call.1} parent=1 // pred_check_branch
      %156 = sbr.rel (0) target = $region77
    $region76: #{tpu_custom_call.1} parent=1 // pred_region
      %158 = dma.done [#allocation8], 7680
    $region77: #{tpu_custom_call.1} parent=1 // pred_fallthru
      _
    // Predicated region
    $region78: #{tpu_custom_call.1} parent=1 // pred_check
      _
    $region79: #{tpu_custom_call.1} parent=1 // pred_check_branch
      %160 = sbr.rel (0) target = $region81
    $region80: #{tpu_custom_call.1} parent=1 // pred_region
      %162 = dma.done [#allocation8], 5504
    $region81: #{tpu_custom_call.1} parent=1 // pred_fallthru
      _
    // Predicated region
    $region82: #{tpu_custom_call.1} parent=1 // pred_check
      _
    $region83: #{tpu_custom_call.1} parent=1 // pred_check_branch
      %164 = sbr.rel (0) target = $region85
    $region84: #{tpu_custom_call.1} parent=1 // pred_region
      %166 = dma.done [#allocation11], 2048
    $region85: #{tpu_custom_call.1} parent=1 // pred_fallthru
      _
    // Predicated region
    $region86: #{tpu_custom_call.1} parent=1 // pred_check
      _
    $region87: #{tpu_custom_call.1} parent=1 // pred_check_branch
      %168 = sbr.rel (0) target = $region89
    $region88: #{tpu_custom_call.1} parent=1 // pred_region
      %170 = dma.done [#allocation11], 4096
    $region89: #{tpu_custom_call.1} parent=1 // pred_fallthru
      _
    // Predicated region
    $region90: #{tpu_custom_call.1} parent=1 // pred_check
      _
    $region91: #{tpu_custom_call.1} parent=1 // pred_check_branch
      %172 = sbr.rel (0) target = $region93
    $region92: #{tpu_custom_call.1} parent=1 // pred_region
      %174 = dma.done [#allocation14], 2048
    $region93: #{tpu_custom_call.1} parent=1 // pred_fallthru
      _
    // Predicated region
    $region94: #{tpu_custom_call.1} parent=1 // pred_check
      _
    $region95: #{tpu_custom_call.1} parent=1 // pred_check_branch
      %176 = sbr.rel (0) target = $region97
    $region96: #{tpu_custom_call.1} parent=1 // pred_region
      %178 = dma.done [#allocation14], 4096
    $region97: #{tpu_custom_call.1} parent=1 // pred_fallthru
      _
    // Predicated region
    $region98: #{tpu_custom_call.1} parent=1 // pred_check
      _
    $region99: #{tpu_custom_call.1} parent=1 // pred_check_branch
      %180 = sbr.rel (0) target = $region101
    $region100: #{tpu_custom_call.1} parent=1 // pred_region
      %182 = dma.done [#allocation17], 2048
    $region101: #{tpu_custom_call.1} parent=1 // pred_fallthru
      _
    %p184 = scmp.eq.s32.totalorder 0, 0
    // Predicated region
    $region102: #{tpu_custom_call.1} parent=1 // pred_check
      %p185 = pneg %p184
    $region103: #{tpu_custom_call.1} parent=1 // pred_check_branch
      %187 = sbr.rel (%p185) target = $region105
    $region104: #{tpu_custom_call.1} parent=1 // pred_region
      %vm188 = vcmask 1041408
      %vm189 = vcmask 1043458
      %vm190 = vmor %vm189, %vm188
      %vm191 = vcmask 1045508
      %vm192 = vmor %vm191, %vm190
      %vm193 = vcmask 785414
      %vm194 = vmor %vm193, %vm192
      %195 = vst.msk [vmem:[#allocation2] sm:$0xff] %vm194, 0.0
    $region105: #{tpu_custom_call.1} parent=1 // pred_fallthru
      _
    %s196 = smul.u32 0, 4
    %s197 = smul.addr %s196, 4
    %s198 = scalar_lea.vmem [#allocation4], %s197
    %v199 = vld [vmem:[%s198] sm:$0xff]
    %v200 = vld [vmem:[%s198 + $0x8] sm:$0xff]
    %v201 = vld [vmem:[%s198 + $0x10] sm:$0xff]
    %v202 = vld [vmem:[%s198 + $0x18] sm:$0xff]
    %v203 = vld [vmem:[%s1] sm:$0xf]
    %v204 = vld [vmem:[%s1 + $0x4] sm:$0xf]
    %v205 = vunpack.c.l.bf16 %v203
    %v206 = vunpack.c.l.bf16 %v204
    %vm207 = vcmp.ne.f32.partialorder %v205, 0.0
    %vm208 = vcmp.ne.f32.partialorder %v206, 0.0
    %v209 = vsel %vm207, 1, 0
    %v210 = vsel %vm208, 1, 0
    %211 = vset.pattern.permute.xlu0 0
    %212 = vperm.xlu0 %211, %v209
    %v213 = vpop.permute.xlu0 %212
    %214 = vset.pattern.permute.xlu0 0
    %215 = vperm.xlu0 %214, %v210
    %v216 = vpop.permute.xlu0 %215
    %vm217 = vcmp.eq.s32.totalorder %v213, 1
    %vm218 = vcmp.eq.s32.totalorder %v216, 1
    %vm219 = vmpackc.low %vm217, %vm217
    %vm220 = vmpackc.low %vm218, %vm218
    %v221 = vsel %vm219, %v199, 0
    %v222 = vsel %vm219, %v200, 0
    %v223 = vsel %vm220, %v201, 0
    %v224 = vsel %vm220, %v202, 0
    %v225 = vunpack.c.l.bf16 %v221
    %v226 = vunpack.c.h.bf16 %v221
    %v227 = vunpack.c.l.bf16 %v222
    %v228 = vunpack.c.h.bf16 %v222
    %v229 = vunpack.c.l.bf16 %v223
    %v230 = vunpack.c.h.bf16 %v223
    %v231 = vunpack.c.l.bf16 %v224
    %v232 = vunpack.c.h.bf16 %v224
    %v233 = vld [vmem:[#allocation2] sm:$0xff]
    %v234 = vrot.slane %v225, 4
    %v235 = vadd.f32 %v225, %v234
    %v236 = vrot.slane %v235, 2
    %v237 = vadd.f32 %v235, %v236
    %v238 = vrot.slane %v237, 1
    %v239 = vadd.f32 %v237, %v238
    %v240 = vrot.slane %v226, 4
    %v241 = vadd.f32 %v226, %v240
    %v242 = vrot.slane %v241, 2
    %v243 = vadd.f32 %v241, %v242
    %v244 = vrot.slane %v243, 1
    %v245 = vadd.f32 %v243, %v244
    %v246 = vrot.slane %v227, 4
    %v247 = vadd.f32 %v227, %v246
    %v248 = vrot.slane %v247, 2
    %v249 = vadd.f32 %v247, %v248
    %v250 = vrot.slane %v249, 1
    %v251 = vadd.f32 %v249, %v250
    %vm252 = vcmask 785408
    %v253 = vsel %vm252, %v228, 0.0
    %v254 = vrot.slane %v253, 4
    %v255 = vadd.f32 %v253, %v254
    %v256 = vrot.slane %v255, 2
    %v257 = vadd.f32 %v255, %v256
    %v258 = vrot.slane %v257, 1
    %v259 = vadd.f32 %v257, %v258
    %v260 = vrot.slane %v229, 4
    %v261 = vadd.f32 %v229, %v260
    %v262 = vrot.slane %v261, 2
    %v263 = vadd.f32 %v261, %v262
    %v264 = vrot.slane %v263, 1
    %v265 = vadd.f32 %v263, %v264
    %v266 = vrot.slane %v230, 4
    %v267 = vadd.f32 %v230, %v266
    %v268 = vrot.slane %v267, 2
    %v269 = vadd.f32 %v267, %v268
    %v270 = vrot.slane %v269, 1
    %v271 = vadd.f32 %v269, %v270
    %v272 = vrot.slane %v231, 4
    %v273 = vadd.f32 %v231, %v272
    %v274 = vrot.slane %v273, 2
    %v275 = vadd.f32 %v273, %v274
    %v276 = vrot.slane %v275, 1
    %v277 = vadd.f32 %v275, %v276
    %v278 = vsel %vm252, %v232, 0.0
    %v279 = vrot.slane %v278, 4
    %v280 = vadd.f32 %v278, %v279
    %v281 = vrot.slane %v280, 2
    %v282 = vadd.f32 %v280, %v281
    %v283 = vrot.slane %v282, 1
    %v284 = vadd.f32 %v282, %v283
    %v293 = vrot.slane %v245, 6
    %v294 = vrot.slane %v251, 4
    %v295 = vrot.slane %v259, 2
    %v296 = vrot.slane %v271, 6
    %v297 = vrot.slane %v277, 4
    %v298 = vrot.slane %v284, 2
    %vm299 = vcmask 1041408
    %v300 = vsel %vm299, %v239, %v293
    %vm301 = vcmask 1045508
    %v302 = vsel %vm301, %v294, %v295
    %vm303 = vcmask 1043456
    %v304 = vsel %vm303, %v300, %v302
    %v305 = vsel %vm299, %v265, %v296
    %v306 = vsel %vm301, %v297, %v298
    %v307 = vsel %vm303, %v305, %v306
    %vm308 = vcmask 1044484
    %v309 = vsel %vm308, %v304, %v304
    %vm310 = vcmask 1046534
    %v311 = vsel %vm310, %v304, %v309
    %v312 = vrot.slane %v307, 7
    %vm313 = vcmask 1041409
    %v314 = vsel %vm313, %v312, %v311
    %vm315 = vcmask 1043459
    %v316 = vsel %vm315, %v312, %v314
    %vm317 = vcmask 1045509
    %v318 = vsel %vm317, %v312, %v316
    %vm319 = vcmask 1047559
    %v320 = vsel %vm319, %v312, %v318
    %v322 = vadd.f32 %v233, %v320
    %vm323 = vcmask 1043458
    %vm324 = vmor %vm323, %vm299
    %vm325 = vmor %vm301, %vm324
    %vm326 = vcmask 785414
    %vm327 = vmor %vm326, %vm325
    %328 = vst.msk [vmem:[#allocation2] sm:$0xff] %vm327, %v322
    // Predicated region
    $region106: #{tpu_custom_call.1} parent=1 // pred_check
      %p329 = pneg %p184
    $region107: #{tpu_custom_call.1} parent=1 // pred_check_branch
      %331 = sbr.rel (%p329) target = $region109
    $region108: #{tpu_custom_call.1} parent=1 // pred_region
      %v332 = vld [vmem:[#allocation2] sm:$0xff]
      %v333 = vld [vmem:[%s2] sm:$0x3]
      %335 = vset.pattern.permute.xlu0 0
      %336 = vperm.xlu0 %335, %v333
      %v337 = vpop.permute.xlu0 %336
      %v339 = vunpack.c.l.s4 269488144
      %v340 = vunpack.c.0.s8 %v339
      %v341 = vperm.slane %v337, %v340
      %v343 = vmul.f32 %v332, %v341
      %345 = vst [vmem:[#allocation1] ss:$4 sm:$0xff] %v343
      %v346 = vld.sshfl [vmem:[#allocation1] sm:$0xff pattern:$0x73625140]
      %v347 = vld.sshfl [vmem:[#allocation1 + $0x8] sm:$0xff pattern:$0x73625140]
      %v348 = vld.sshfl [vmem:[#allocation1 + $0x10] sm:$0xff pattern:$0x73625140]
      %v349 = vld.sshfl [vmem:[#allocation1 + $0x18] sm:$0xff pattern:$0x73625140]
      %v354 = vpack.c.bf16 %v346, %v346
      %v355 = vpack.c.bf16 %v347, %v347
      %v356 = vpack.c.bf16 %v348, %v348
      %v357 = vpack.c.bf16 %v349, %v349
      %v358 = vld [vmem:[#allocation7] sm:$0xff]
      %v359 = vld [vmem:[#allocation7 + $0x8] sm:$0xff]
      %v360 = vld [vmem:[#allocation7 + $0x10] sm:$0xff]
      %v361 = vld [vmem:[#allocation7 + $0x18] sm:$0xff]
      %v362 = vld [vmem:[#allocation7 + $0x20] sm:$0xff]
      %v363 = vld [vmem:[#allocation7 + $0x28] sm:$0xff]
      %v364 = vld [vmem:[#allocation7 + $0x30] sm:$0xff]
      %v365 = vld [vmem:[#allocation7 + $0x38] sm:$0xff]
      %v366 = vld [vmem:[#allocation7 + $0x40] sm:$0xff]
      %v367 = vld [vmem:[#allocation7 + $0x48] sm:$0xff]
      %v368 = vld [vmem:[#allocation7 + $0x50] sm:$0xff]
      %v369 = vld [vmem:[#allocation7 + $0x58] sm:$0xff]
      %v370 = vld [vmem:[#allocation7 + $0x60] sm:$0xff]
      %v371 = vld [vmem:[#allocation7 + $0x68] sm:$0xff]
      %v372 = vld [vmem:[#allocation7 + $0x70] sm:$0xff]
      %v373 = vld [vmem:[#allocation7 + $0x78] sm:$0xff]
      %v374 = vld [vmem:[#allocation7 + $0x80] sm:$0xff]
      %v375 = vld [vmem:[#allocation7 + $0x88] sm:$0xff]
      %v376 = vld [vmem:[#allocation7 + $0x90] sm:$0xff]
      %v377 = vld [vmem:[#allocation7 + $0x98] sm:$0xff]
      %v378 = vld [vmem:[#allocation7 + $0xa0] sm:$0xff]
      %v379 = vld [vmem:[#allocation7 + $0xa8] sm:$0xff]
      %v380 = vld [vmem:[#allocation7 + $0xb0] sm:$0xff]
      %v381 = vld [vmem:[#allocation7 + $0xb8] sm:$0xff]
      %v382 = vld [vmem:[#allocation7 + $0xc0] sm:$0xff]
      %v383 = vld [vmem:[#allocation7 + $0xc8] sm:$0xff]
      %v384 = vld [vmem:[#allocation7 + $0xd0] sm:$0xff]
      %v385 = vld [vmem:[#allocation7 + $0xd8] sm:$0xff]
      %v386 = vld [vmem:[#allocation7 + $0xe0] sm:$0xff]
      %v387 = vld [vmem:[#allocation7 + $0xe8] sm:$0xff]
      %v388 = vld [vmem:[#allocation7 + $0xf0] sm:$0xff]
      %v389 = vld [vmem:[#allocation7 + $0xf8] sm:$0xff]
      %v390 = vld [vmem:[#allocation7 + $0x100] sm:$0xff]
      %v391 = vld [vmem:[#allocation7 + $0x108] sm:$0xff]
      %v392 = vld [vmem:[#allocation7 + $0x110] sm:$0xff]
      %v393 = vld [vmem:[#allocation7 + $0x118] sm:$0xff]
      %v394 = vld [vmem:[#allocation7 + $0x120] sm:$0xff]
      %v395 = vld [vmem:[#allocation7 + $0x128] sm:$0xff]
      %v396 = vld [vmem:[#allocation7 + $0x130] sm:$0xff]
      %v397 = vld [vmem:[#allocation7 + $0x138] sm:$0xff]
      %v398 = vld [vmem:[#allocation7 + $0x140] sm:$0xff]
      %v399 = vld [vmem:[#allocation7 + $0x148] sm:$0xff]
      %v400 = vld [vmem:[#allocation7 + $0x150] sm:$0xff]
      %v401 = vld [vmem:[#allocation7 + $0x158] sm:$0xff]
      %v402 = vld [vmem:[#allocation7 + $0x160] sm:$0xff]
      %v403 = vld [vmem:[#allocation7 + $0x168] sm:$0xff]
      %v404 = vld [vmem:[#allocation7 + $0x170] sm:$0xff]
      %v405 = vld [vmem:[#allocation7 + $0x178] sm:$0xff]
      %v406 = vld [vmem:[#allocation7 + $0x180] sm:$0xff]
      %v407 = vld [vmem:[#allocation7 + $0x188] sm:$0xff]
      %v408 = vld [vmem:[#allocation7 + $0x190] sm:$0xff]
      %v409 = vld [vmem:[#allocation7 + $0x198] sm:$0xff]
      %v410 = vld [vmem:[#allocation7 + $0x1a0] sm:$0xff]
      %v411 = vld [vmem:[#allocation7 + $0x1a8] sm:$0xff]
      %v412 = vld [vmem:[#allocation7 + $0x1b0] sm:$0xff]
      %v413 = vld [vmem:[#allocation7 + $0x1b8] sm:$0xff]
      %v414 = vld [vmem:[#allocation7 + $0x1c0] sm:$0xff]
      %v415 = vld [vmem:[#allocation7 + $0x1c8] sm:$0xff]
      %v416 = vld [vmem:[#allocation7 + $0x1d0] sm:$0xff]
      %v417 = vld [vmem:[#allocation7 + $0x1d8] sm:$0xff]
      %v418 = vld [vmem:[%s5] sm:$0x3]
      %v420 = vperm.slane %v418, 0
      %v421 = vperm.slane %v418, 1
      %v484 = vunpack.c.l.b16 %v358
      %v485 = vunpack.c.h.b16 %v358
      %v486 = vunpack.c.l.b16 %v359
      %v487 = vunpack.c.h.b16 %v359
      %v488 = vunpack.c.l.b16 %v360
      %v489 = vunpack.c.h.b16 %v360
      %v490 = vunpack.c.l.b16 %v361
      %v491 = vunpack.c.h.b16 %v361
      %v492 = vunpack.c.l.b16 %v362
      %v493 = vunpack.c.h.b16 %v362
      %v494 = vunpack.c.l.b16 %v363
      %v495 = vunpack.c.h.b16 %v363
      %v496 = vunpack.c.l.b16 %v364
      %v497 = vunpack.c.h.b16 %v364
      %v498 = vunpack.c.l.b16 %v365
      %v499 = vunpack.c.h.b16 %v365
      %v500 = vunpack.c.l.b16 %v366
      %v501 = vunpack.c.h.b16 %v366
      %v502 = vunpack.c.l.b16 %v367
      %v503 = vunpack.c.h.b16 %v367
      %v504 = vunpack.c.l.b16 %v368
      %v505 = vunpack.c.h.b16 %v368
      %v506 = vunpack.c.l.b16 %v369
      %v507 = vunpack.c.h.b16 %v369
      %v508 = vunpack.c.l.b16 %v370
      %v509 = vunpack.c.h.b16 %v370
      %v510 = vunpack.c.l.b16 %v371
      %v511 = vunpack.c.h.b16 %v371
      %v512 = vunpack.c.l.b16 %v372
      %v513 = vunpack.c.h.b16 %v372
      %v514 = vunpack.c.l.b16 %v373
      %v515 = vunpack.c.h.b16 %v373
      %v516 = vunpack.c.l.b16 %v374
      %v517 = vunpack.c.h.b16 %v374
      %v518 = vunpack.c.l.b16 %v375
      %v519 = vunpack.c.h.b16 %v375
      %v520 = vunpack.c.l.b16 %v376
      %v521 = vunpack.c.h.b16 %v376
      %v522 = vunpack.c.l.b16 %v377
      %v523 = vunpack.c.h.b16 %v377
      %v524 = vunpack.c.l.b16 %v378
      %v525 = vunpack.c.h.b16 %v378
      %v526 = vunpack.c.l.b16 %v379
      %v527 = vunpack.c.h.b16 %v379
      %v528 = vunpack.c.l.b16 %v380
      %v529 = vunpack.c.h.b16 %v380
      %v530 = vunpack.c.l.b16 %v381
      %v531 = vunpack.c.h.b16 %v381
      %v532 = vunpack.c.l.b16 %v382
      %v533 = vunpack.c.h.b16 %v382
      %v534 = vunpack.c.l.b16 %v383
      %v535 = vunpack.c.h.b16 %v383
      %v536 = vunpack.c.l.b16 %v384
      %v537 = vunpack.c.h.b16 %v384
      %v538 = vunpack.c.l.b16 %v385
      %v539 = vunpack.c.h.b16 %v385
      %v540 = vunpack.c.l.b16 %v386
      %v541 = vunpack.c.h.b16 %v386
      %v542 = vunpack.c.l.b16 %v387
      %v543 = vunpack.c.h.b16 %v387
      %v544 = vunpack.c.l.b16 %v388
      %v545 = vunpack.c.h.b16 %v388
      %v546 = vunpack.c.l.b16 %v389
      %v547 = vunpack.c.h.b16 %v389
      %v548 = vunpack.c.l.b16 %v390
      %v549 = vunpack.c.h.b16 %v390
      %v550 = vunpack.c.l.b16 %v391
      %v551 = vunpack.c.h.b16 %v391
      %v552 = vunpack.c.l.b16 %v392
      %v553 = vunpack.c.h.b16 %v392
      %v554 = vunpack.c.l.b16 %v393
      %v555 = vunpack.c.h.b16 %v393
      %v556 = vunpack.c.l.b16 %v394
      %v557 = vunpack.c.h.b16 %v394
      %v558 = vunpack.c.l.b16 %v395
      %v559 = vunpack.c.h.b16 %v395
      %v560 = vunpack.c.l.b16 %v396
      %v561 = vunpack.c.h.b16 %v396
      %v562 = vunpack.c.l.b16 %v397
      %v563 = vunpack.c.h.b16 %v397
      %v564 = vunpack.c.l.b16 %v398
      %v565 = vunpack.c.h.b16 %v398
      %v566 = vunpack.c.l.b16 %v399
      %v567 = vunpack.c.h.b16 %v399
      %v568 = vunpack.c.l.b16 %v400
      %v569 = vunpack.c.h.b16 %v400
      %v570 = vunpack.c.l.b16 %v401
      %v571 = vunpack.c.h.b16 %v401
      %v572 = vunpack.c.l.b16 %v402
      %v573 = vunpack.c.h.b16 %v402
      %v574 = vunpack.c.l.b16 %v403
      %v575 = vunpack.c.h.b16 %v403
      %v576 = vunpack.c.l.b16 %v404
      %v577 = vunpack.c.h.b16 %v404
      %v578 = vunpack.c.l.b16 %v405
      %v579 = vunpack.c.h.b16 %v405
      %v580 = vunpack.c.l.b16 %v406
      %v581 = vunpack.c.h.b16 %v406
      %v582 = vunpack.c.l.b16 %v407
      %v583 = vunpack.c.h.b16 %v407
      %v584 = vunpack.c.l.b16 %v408
      %v585 = vunpack.c.h.b16 %v408
      %v586 = vunpack.c.l.b16 %v409
      %v587 = vunpack.c.h.b16 %v409
      %v588 = vunpack.c.l.b16 %v410
      %v589 = vunpack.c.h.b16 %v410
      %v590 = vunpack.c.l.b16 %v411
      %v591 = vunpack.c.h.b16 %v411
      %v592 = vunpack.c.l.b16 %v412
      %v593 = vunpack.c.h.b16 %v412
      %v594 = vunpack.c.l.b16 %v413
      %v595 = vunpack.c.h.b16 %v413
      %v596 = vunpack.c.l.b16 %v414
      %v597 = vunpack.c.h.b16 %v414
      %v598 = vunpack.c.l.b16 %v415
      %v599 = vunpack.c.h.b16 %v415
      %v600 = vunpack.c.l.b16 %v416
      %v601 = vunpack.c.h.b16 %v416
      %v602 = vunpack.c.l.b16 %v417
      %v603 = vunpack.c.h.b16 %v417
      %v604 = vpack.c.b16 %v486, %v484
      %v605 = vpack.c.b16 %v487, %v485
      %v606 = vpack.c.b16 %v490, %v488
      %v607 = vpack.c.b16 %v491, %v489
      %v608 = vpack.c.b16 %v494, %v492
      %v609 = vpack.c.b16 %v495, %v493
      %v610 = vpack.c.b16 %v498, %v496
      %v611 = vpack.c.b16 %v499, %v497
      %v612 = vpack.c.b16 %v502, %v500
      %v613 = vpack.c.b16 %v503, %v501
      %v614 = vpack.c.b16 %v506, %v504
      %v615 = vpack.c.b16 %v507, %v505
      %v616 = vpack.c.b16 %v510, %v508
      %v617 = vpack.c.b16 %v511, %v509
      %v618 = vpack.c.b16 %v514, %v512
      %v619 = vpack.c.b16 %v515, %v513
      %v620 = vpack.c.b16 %v518, %v516
      %v621 = vpack.c.b16 %v519, %v517
      %v622 = vpack.c.b16 %v522, %v520
      %v623 = vpack.c.b16 %v523, %v521
      %v624 = vpack.c.b16 %v526, %v524
      %v625 = vpack.c.b16 %v527, %v525
      %v626 = vpack.c.b16 %v530, %v528
      %v627 = vpack.c.b16 %v531, %v529
      %v628 = vpack.c.b16 %v534, %v532
      %v629 = vpack.c.b16 %v535, %v533
      %v630 = vpack.c.b16 %v538, %v536
      %v631 = vpack.c.b16 %v539, %v537
      %v632 = vpack.c.b16 %v542, %v540
      %v633 = vpack.c.b16 %v543, %v541
      %v634 = vpack.c.b16 %v546, %v544
      %v635 = vpack.c.b16 %v547, %v545
      %v636 = vpack.c.b16 %v550, %v548
      %v637 = vpack.c.b16 %v551, %v549
      %v638 = vpack.c.b16 %v554, %v552
      %v639 = vpack.c.b16 %v555, %v553
      %v640 = vpack.c.b16 %v558, %v556
      %v641 = vpack.c.b16 %v559, %v557
      %v642 = vpack.c.b16 %v562, %v560
      %v643 = vpack.c.b16 %v563, %v561
      %v644 = vpack.c.b16 %v566, %v564
      %v645 = vpack.c.b16 %v567, %v565
      %v646 = vpack.c.b16 %v570, %v568
      %v647 = vpack.c.b16 %v571, %v569
      %v648 = vpack.c.b16 %v574, %v572
      %v649 = vpack.c.b16 %v575, %v573
      %v650 = vpack.c.b16 %v578, %v576
      %v651 = vpack.c.b16 %v579, %v577
      %v652 = vpack.c.b16 %v582, %v580
      %v653 = vpack.c.b16 %v583, %v581
      %v654 = vpack.c.b16 %v586, %v584
      %v655 = vpack.c.b16 %v587, %v585
      %v656 = vpack.c.b16 %v590, %v588
      %v657 = vpack.c.b16 %v591, %v589
      %v658 = vpack.c.b16 %v594, %v592
      %v659 = vpack.c.b16 %v595, %v593
      %v660 = vpack.c.b16 %v598, %v596
      %v661 = vpack.c.b16 %v599, %v597
      %v662 = vpack.c.b16 %v602, %v600
      %v663 = vpack.c.b16 %v603, %v601
      %v725 = vsel %vm252, %v357, 0
      %727 = vmatpush.bf16.msra.mxu0 %v618
      %728 = vmatpush.bf16.msra.mxu0 %v616
      %729 = vmatpush.bf16.msra.mxu0 %v614
      %730 = vmatpush.bf16.msra.mxu0 %v612
      %731 = vmatpush.bf16.msra.mxu0 %v610
      %732 = vmatpush.bf16.msra.mxu0 %v608
      %733 = vmatpush.bf16.msra.mxu0 %v606
      %734 = vmatpush.bf16.msra.mxu0 %v604
      %735 = vmatmul.bf16.gmra.mxu0 %v354
      %v736 = vpop.f32.mrf.mxu0
      %v737 = vadd.f32 %v420, %v736
      %v738 = vpop.f32.mrf.mxu0
      %739 = vdwg.mxu0
      %740 = vmatpush.bf16.msra.mxu0 %v634
      %741 = vmatpush.bf16.msra.mxu0 %v632
      %742 = vmatpush.bf16.msra.mxu0 %v630
      %743 = vmatpush.bf16.msra.mxu0 %v628
      %744 = vmatpush.bf16.msra.mxu0 %v626
      %745 = vmatpush.bf16.msra.mxu0 %v624
      %746 = vmatpush.bf16.msra.mxu0 %v622
      %747 = vmatpush.bf16.msra.mxu0 %v620
      %748 = vmatmul.bf16.gmra.mxu0 %v355
      %v749 = vpop.f32.mrf.mxu0
      %v750 = vadd.f32 %v737, %v749
      %v751 = vpop.f32.mrf.mxu0
      %752 = vdwg.mxu0
      %753 = vmatpush.bf16.msra.mxu0 %v650
      %754 = vmatpush.bf16.msra.mxu0 %v648
      %755 = vmatpush.bf16.msra.mxu0 %v646
      %756 = vmatpush.bf16.msra.mxu0 %v644
      %757 = vmatpush.bf16.msra.mxu0 %v642
      %758 = vmatpush.bf16.msra.mxu0 %v640
      %759 = vmatpush.bf16.msra.mxu0 %v638
      %760 = vmatpush.bf16.msra.mxu0 %v636
      %761 = vmatmul.bf16.gmra.mxu0 %v356
      %v762 = vpop.f32.mrf.mxu0
      %v763 = vadd.f32 %v750, %v762
      %v764 = vpop.f32.mrf.mxu0
      %765 = vdwg.mxu0
      %766 = vmatpush.bf16.msra.mxu0 0
      %767 = vmatpush.bf16.msra.mxu0 0
      %768 = vmatpush.bf16.msra.mxu0 %v662
      %769 = vmatpush.bf16.msra.mxu0 %v660
      %770 = vmatpush.bf16.msra.mxu0 %v658
      %771 = vmatpush.bf16.msra.mxu0 %v656
      %772 = vmatpush.bf16.msra.mxu0 %v654
      %773 = vmatpush.bf16.msra.mxu0 %v652
      %774 = vmatmul.bf16.gmra.mxu0 %v725
      %v775 = vpop.f32.mrf.mxu0
      %v776 = vadd.f32 %v763, %v775
      %v777 = vpop.f32.mrf.mxu0
      %778 = vdwg.mxu0
      %779 = vmatpush.bf16.msra.mxu0 %v619
      %780 = vmatpush.bf16.msra.mxu0 %v617
      %781 = vmatpush.bf16.msra.mxu0 %v615
      %782 = vmatpush.bf16.msra.mxu0 %v613
      %783 = vmatpush.bf16.msra.mxu0 %v611
      %784 = vmatpush.bf16.msra.mxu0 %v609
      %785 = vmatpush.bf16.msra.mxu0 %v607
      %786 = vmatpush.bf16.msra.mxu0 %v605
      %787 = vmatmul.bf16.gmra.mxu0 %v354
      %v788 = vpop.f32.mrf.mxu0
      %v789 = vadd.f32 %v421, %v788
      %v790 = vpop.f32.mrf.mxu0
      %791 = vdwg.mxu0
      %792 = vmatpush.bf16.msra.mxu0 %v635
      %793 = vmatpush.bf16.msra.mxu0 %v633
      %794 = vmatpush.bf16.msra.mxu0 %v631
      %795 = vmatpush.bf16.msra.mxu0 %v629
      %796 = vmatpush.bf16.msra.mxu0 %v627
      %797 = vmatpush.bf16.msra.mxu0 %v625
      %798 = vmatpush.bf16.msra.mxu0 %v623
      %799 = vmatpush.bf16.msra.mxu0 %v621
      %800 = vmatmul.bf16.gmra.mxu0 %v355
      %v801 = vpop.f32.mrf.mxu0
      %v802 = vadd.f32 %v789, %v801
      %v803 = vpop.f32.mrf.mxu0
      %804 = vdwg.mxu0
      %805 = vmatpush.bf16.msra.mxu0 %v651
      %806 = vmatpush.bf16.msra.mxu0 %v649
      %807 = vmatpush.bf16.msra.mxu0 %v647
      %808 = vmatpush.bf16.msra.mxu0 %v645
      %809 = vmatpush.bf16.msra.mxu0 %v643
      %810 = vmatpush.bf16.msra.mxu0 %v641
      %811 = vmatpush.bf16.msra.mxu0 %v639
      %812 = vmatpush.bf16.msra.mxu0 %v637
      %813 = vmatmul.bf16.gmra.mxu0 %v356
      %v814 = vpop.f32.mrf.mxu0
      %v815 = vadd.f32 %v802, %v814
      %v816 = vpop.f32.mrf.mxu0
      %817 = vdwg.mxu0
      %818 = vmatpush.bf16.msra.mxu0 0
      %819 = vmatpush.bf16.msra.mxu0 0
      %820 = vmatpush.bf16.msra.mxu0 %v663
      %821 = vmatpush.bf16.msra.mxu0 %v661
      %822 = vmatpush.bf16.msra.mxu0 %v659
      %823 = vmatpush.bf16.msra.mxu0 %v657
      %824 = vmatpush.bf16.msra.mxu0 %v655
      %825 = vmatpush.bf16.msra.mxu0 %v653
      %826 = vmatmul.bf16.gmra.mxu0 %v725
      %v827 = vpop.f32.mrf.mxu0
      %v828 = vadd.f32 %v815, %v827
      %v829 = vpop.f32.mrf.mxu0
      %830 = vdwg.mxu0
      %v831 = vld [vmem:[%s3] sm:$0x7]
      %v832 = vld [vmem:[#allocation9] sm:$0xff]
      %v833 = vld [vmem:[#allocation9 + $0x8] sm:$0xff]
      %v834 = vld [vmem:[#allocation9 + $0x10] sm:$0xff]
      %v835 = vld [vmem:[#allocation9 + $0x18] sm:$0xff]
      %v836 = vld [vmem:[#allocation9 + $0x20] sm:$0xff]
      %v837 = vld [vmem:[#allocation9 + $0x28] sm:$0xff]
      %v838 = vld [vmem:[#allocation9 + $0x30] sm:$0xff]
      %v839 = vld [vmem:[#allocation9 + $0x38] sm:$0xff]
      %v840 = vld [vmem:[#allocation9 + $0x40] sm:$0xff]
      %v841 = vld [vmem:[#allocation9 + $0x48] sm:$0xff]
      %v842 = vld [vmem:[#allocation9 + $0x50] sm:$0xff]
      %v843 = vld [vmem:[#allocation9 + $0x58] sm:$0xff]
      %v844 = vld [vmem:[#allocation9 + $0x60] sm:$0xff]
      %v845 = vld [vmem:[#allocation9 + $0x68] sm:$0xff]
      %v846 = vld [vmem:[#allocation9 + $0x70] sm:$0xff]
      %v847 = vld [vmem:[#allocation9 + $0x78] sm:$0xff]
      %v848 = vld [vmem:[#allocation9 + $0x80] sm:$0xff]
      %v849 = vld [vmem:[#allocation9 + $0x88] sm:$0xff]
      %v850 = vld [vmem:[#allocation9 + $0x90] sm:$0xff]
      %v851 = vld [vmem:[#allocation9 + $0x98] sm:$0xff]
      %v852 = vld [vmem:[#allocation9 + $0xa0] sm:$0xff]
      %v853 = vld [vmem:[#allocation9 + $0xa8] sm:$0xff]
      %v854 = vld [vmem:[#allocation9 + $0xb0] sm:$0xff]
      %v855 = vld [vmem:[#allocation9 + $0xb8] sm:$0xff]
      %v856 = vld [vmem:[#allocation9 + $0xc0] sm:$0xff]
      %v857 = vld [vmem:[#allocation9 + $0xc8] sm:$0xff]
      %v858 = vld [vmem:[#allocation9 + $0xd0] sm:$0xff]
      %v859 = vld [vmem:[#allocation9 + $0xd8] sm:$0xff]
      %v860 = vld [vmem:[#allocation9 + $0xe0] sm:$0xff]
      %v861 = vld [vmem:[#allocation9 + $0xe8] sm:$0xff]
      %v862 = vld [vmem:[#allocation9 + $0xf0] sm:$0xff]
      %v863 = vld [vmem:[#allocation9 + $0xf8] sm:$0xff]
      %v864 = vld [vmem:[#allocation9 + $0x100] sm:$0xff]
      %v865 = vld [vmem:[#allocation9 + $0x108] sm:$0xff]
      %v866 = vld [vmem:[#allocation9 + $0x110] sm:$0xff]
      %v867 = vld [vmem:[#allocation9 + $0x118] sm:$0xff]
      %v868 = vld [vmem:[#allocation9 + $0x120] sm:$0xff]
      %v869 = vld [vmem:[#allocation9 + $0x128] sm:$0xff]
      %v870 = vld [vmem:[#allocation9 + $0x130] sm:$0xff]
      %v871 = vld [vmem:[#allocation9 + $0x138] sm:$0xff]
      %v872 = vld [vmem:[#allocation9 + $0x140] sm:$0xff]
      %v873 = vld [vmem:[#allocation9 + $0x148] sm:$0xff]
      %v874 = vld [vmem:[#allocation9 + $0x150] sm:$0x33]
      %v875 = vld [vmem:[%s7] sm:$0x3]
      %v877 = vperm.slane %v875, 0
      %v878 = vperm.slane %v875, 1
      %882 = vst [vmem:[#allocation1] ss:$9 sm:$0xff] %v831
      %v883 = vld [vmem:[#allocation1] sm:$0xff]
      %v884 = vld [vmem:[#allocation1 + $0x9] sm:$0xff]
      %v885 = vld [vmem:[#allocation1 + $0x12] sm:$0xff]
      %v931 = vunpack.c.l.b16 %v832
      %v932 = vunpack.c.h.b16 %v832
      %v933 = vunpack.c.l.b16 %v833
      %v934 = vunpack.c.h.b16 %v833
      %v935 = vunpack.c.l.b16 %v834
      %v936 = vunpack.c.h.b16 %v834
      %v937 = vunpack.c.l.b16 %v835
      %v938 = vunpack.c.h.b16 %v835
      %v939 = vunpack.c.l.b16 %v836
      %v940 = vunpack.c.h.b16 %v836
      %v941 = vunpack.c.l.b16 %v837
      %v942 = vunpack.c.h.b16 %v837
      %v943 = vunpack.c.l.b16 %v838
      %v944 = vunpack.c.h.b16 %v838
      %v945 = vunpack.c.l.b16 %v839
      %v946 = vunpack.c.h.b16 %v839
      %v947 = vunpack.c.l.b16 %v840
      %v948 = vunpack.c.h.b16 %v840
      %v949 = vunpack.c.l.b16 %v841
      %v950 = vunpack.c.h.b16 %v841
      %v951 = vunpack.c.l.b16 %v842
      %v952 = vunpack.c.h.b16 %v842
      %v953 = vunpack.c.l.b16 %v843
      %v954 = vunpack.c.h.b16 %v843
      %v955 = vunpack.c.l.b16 %v844
      %v956 = vunpack.c.h.b16 %v844
      %v957 = vunpack.c.l.b16 %v845
      %v958 = vunpack.c.h.b16 %v845
      %v959 = vunpack.c.l.b16 %v846
      %v960 = vunpack.c.h.b16 %v846
      %v961 = vunpack.c.l.b16 %v847
      %v962 = vunpack.c.h.b16 %v847
      %v963 = vunpack.c.l.b16 %v848
      %v964 = vunpack.c.h.b16 %v848
      %v965 = vunpack.c.l.b16 %v849
      %v966 = vunpack.c.h.b16 %v849
      %v967 = vunpack.c.l.b16 %v850
      %v968 = vunpack.c.h.b16 %v850
      %v969 = vunpack.c.l.b16 %v851
      %v970 = vunpack.c.h.b16 %v851
      %v971 = vunpack.c.l.b16 %v852
      %v972 = vunpack.c.h.b16 %v852
      %v973 = vunpack.c.l.b16 %v853
      %v974 = vunpack.c.h.b16 %v853
      %v975 = vunpack.c.l.b16 %v854
      %v976 = vunpack.c.h.b16 %v854
      %v977 = vunpack.c.l.b16 %v855
      %v978 = vunpack.c.h.b16 %v855
      %v979 = vunpack.c.l.b16 %v856
      %v980 = vunpack.c.h.b16 %v856
      %v981 = vunpack.c.l.b16 %v857
      %v982 = vunpack.c.h.b16 %v857
      %v983 = vunpack.c.l.b16 %v858
      %v984 = vunpack.c.h.b16 %v858
      %v985 = vunpack.c.l.b16 %v859
      %v986 = vunpack.c.h.b16 %v859
      %v987 = vunpack.c.l.b16 %v860
      %v988 = vunpack.c.h.b16 %v860
      %v989 = vunpack.c.l.b16 %v861
      %v990 = vunpack.c.h.b16 %v861
      %v991 = vunpack.c.l.b16 %v862
      %v992 = vunpack.c.h.b16 %v862
      %v993 = vunpack.c.l.b16 %v863
      %v994 = vunpack.c.h.b16 %v863
      %v995 = vunpack.c.l.b16 %v864
      %v996 = vunpack.c.h.b16 %v864
      %v997 = vunpack.c.l.b16 %v865
      %v998 = vunpack.c.h.b16 %v865
      %v999 = vunpack.c.l.b16 %v866
      %v1000 = vunpack.c.h.b16 %v866
      %v1001 = vunpack.c.l.b16 %v867
      %v1002 = vunpack.c.h.b16 %v867
      %v1003 = vunpack.c.l.b16 %v868
      %v1004 = vunpack.c.h.b16 %v868
      %v1005 = vunpack.c.l.b16 %v869
      %v1006 = vunpack.c.h.b16 %v869
      %v1007 = vunpack.c.l.b16 %v870
      %v1008 = vunpack.c.h.b16 %v870
      %v1009 = vunpack.c.l.b16 %v871
      %v1010 = vunpack.c.h.b16 %v871
      %v1011 = vunpack.c.l.b16 %v872
      %v1012 = vunpack.c.h.b16 %v872
      %v1013 = vunpack.c.l.b16 %v873
      %v1014 = vunpack.c.h.b16 %v873
      %v1015 = vunpack.c.l.b16 %v874
      %v1016 = vunpack.c.h.b16 %v874
      %v1017 = vpack.c.b16 %v933, %v931
      %v1018 = vpack.c.b16 %v934, %v932
      %v1019 = vpack.c.b16 %v937, %v935
      %v1020 = vpack.c.b16 %v938, %v936
      %v1021 = vpack.c.b16 %v941, %v939
      %v1022 = vpack.c.b16 %v942, %v940
      %v1023 = vpack.c.b16 %v945, %v943
      %v1024 = vpack.c.b16 %v946, %v944
      %v1025 = vpack.c.b16 %v949, %v947
      %v1026 = vpack.c.b16 %v950, %v948
      %v1027 = vpack.c.b16 %v953, %v951
      %v1028 = vpack.c.b16 %v954, %v952
      %v1029 = vpack.c.b16 %v957, %v955
      %v1030 = vpack.c.b16 %v958, %v956
      %v1031 = vpack.c.b16 %v961, %v959
      %v1032 = vpack.c.b16 %v962, %v960
      %v1033 = vpack.c.b16 %v965, %v963
      %v1034 = vpack.c.b16 %v966, %v964
      %v1035 = vpack.c.b16 %v969, %v967
      %v1036 = vpack.c.b16 %v970, %v968
      %v1037 = vpack.c.b16 %v973, %v971
      %v1038 = vpack.c.b16 %v974, %v972
      %v1039 = vpack.c.b16 %v977, %v975
      %v1040 = vpack.c.b16 %v978, %v976
      %v1041 = vpack.c.b16 %v981, %v979
      %v1042 = vpack.c.b16 %v982, %v980
      %v1043 = vpack.c.b16 %v985, %v983
      %v1044 = vpack.c.b16 %v986, %v984
      %v1045 = vpack.c.b16 %v989, %v987
      %v1046 = vpack.c.b16 %v990, %v988
      %v1047 = vpack.c.b16 %v993, %v991
      %v1048 = vpack.c.b16 %v994, %v992
      %v1049 = vpack.c.b16 %v997, %v995
      %v1050 = vpack.c.b16 %v998, %v996
      %v1051 = vpack.c.b16 %v1001, %v999
      %v1052 = vpack.c.b16 %v1002, %v1000
      %v1053 = vpack.c.b16 %v1005, %v1003
      %v1054 = vpack.c.b16 %v1006, %v1004
      %v1055 = vpack.c.b16 %v1009, %v1007
      %v1056 = vpack.c.b16 %v1010, %v1008
      %v1057 = vpack.c.b16 %v1013, %v1011
      %v1058 = vpack.c.b16 %v1014, %v1012
      %v1059 = vpack.c.b16 %v1015, %v1015
      %v1060 = vpack.c.b16 %v1016, %v1016
      %vm1103 = vcmask 687104
      %v1104 = vsel %vm1103, %v885, 0
      %v1107 = vsel %vm299, %v1059, 0
      %v1110 = vsel %vm299, %v1060, 0
      %1112 = vmatpush.bf16.msra.mxu0 %v1031
      %1113 = vmatpush.bf16.msra.mxu0 %v1029
      %1114 = vmatpush.bf16.msra.mxu0 %v1027
      %1115 = vmatpush.bf16.msra.mxu0 %v1025
      %1116 = vmatpush.bf16.msra.mxu0 %v1023
      %1117 = vmatpush.bf16.msra.mxu0 %v1021
      %1118 = vmatpush.bf16.msra.mxu0 %v1019
      %1119 = vmatpush.bf16.msra.mxu0 %v1017
      %1120 = vmatmul.bf16.gmra.mxu0 %v883
      %v1121 = vpop.f32.mrf.mxu0
      %v1122 = vadd.f32 %v877, %v1121
      %v1123 = vpop.f32.mrf.mxu0
      %1124 = vdwg.mxu0
      %1125 = vmatpush.bf16.msra.mxu0 %v1047
      %1126 = vmatpush.bf16.msra.mxu0 %v1045
      %1127 = vmatpush.bf16.msra.mxu0 %v1043
      %1128 = vmatpush.bf16.msra.mxu0 %v1041
      %1129 = vmatpush.bf16.msra.mxu0 %v1039
      %1130 = vmatpush.bf16.msra.mxu0 %v1037
      %1131 = vmatpush.bf16.msra.mxu0 %v1035
      %1132 = vmatpush.bf16.msra.mxu0 %v1033
      %1133 = vmatmul.bf16.gmra.mxu0 %v884
      %v1134 = vpop.f32.mrf.mxu0
      %v1135 = vadd.f32 %v1122, %v1134
      %v1136 = vpop.f32.mrf.mxu0
      %1137 = vdwg.mxu0
      %1138 = vmatpush.bf16.msra.mxu0 0
      %1139 = vmatpush.bf16.msra.mxu0 0
      %1140 = vmatpush.bf16.msra.mxu0 %v1107
      %1141 = vmatpush.bf16.msra.mxu0 %v1057
      %1142 = vmatpush.bf16.msra.mxu0 %v1055
      %1143 = vmatpush.bf16.msra.mxu0 %v1053
      %1144 = vmatpush.bf16.msra.mxu0 %v1051
      %1145 = vmatpush.bf16.msra.mxu0 %v1049
      %1146 = vmatmul.bf16.gmra.mxu0 %v1104
      %v1147 = vpop.f32.mrf.mxu0
      %v1148 = vadd.f32 %v1135, %v1147
      %v1149 = vpop.f32.mrf.mxu0
      %1150 = vdwg.mxu0
      %1151 = vmatpush.bf16.msra.mxu0 %v1032
      %1152 = vmatpush.bf16.msra.mxu0 %v1030
      %1153 = vmatpush.bf16.msra.mxu0 %v1028
      %1154 = vmatpush.bf16.msra.mxu0 %v1026
      %1155 = vmatpush.bf16.msra.mxu0 %v1024
      %1156 = vmatpush.bf16.msra.mxu0 %v1022
      %1157 = vmatpush.bf16.msra.mxu0 %v1020
      %1158 = vmatpush.bf16.msra.mxu0 %v1018
      %1159 = vmatmul.bf16.gmra.mxu0 %v883
      %v1160 = vpop.f32.mrf.mxu0
      %v1161 = vadd.f32 %v878, %v1160
      %v1162 = vpop.f32.mrf.mxu0
      %1163 = vdwg.mxu0
      %1164 = vmatpush.bf16.msra.mxu0 %v1048
      %1165 = vmatpush.bf16.msra.mxu0 %v1046
      %1166 = vmatpush.bf16.msra.mxu0 %v1044
      %1167 = vmatpush.bf16.msra.mxu0 %v1042
      %1168 = vmatpush.bf16.msra.mxu0 %v1040
      %1169 = vmatpush.bf16.msra.mxu0 %v1038
      %1170 = vmatpush.bf16.msra.mxu0 %v1036
      %1171 = vmatpush.bf16.msra.mxu0 %v1034
      %1172 = vmatmul.bf16.gmra.mxu0 %v884
      %v1173 = vpop.f32.mrf.mxu0
      %v1174 = vadd.f32 %v1161, %v1173
      %v1175 = vpop.f32.mrf.mxu0
      %1176 = vdwg.mxu0
      %1177 = vmatpush.bf16.msra.mxu0 0
      %1178 = vmatpush.bf16.msra.mxu0 0
      %1179 = vmatpush.bf16.msra.mxu0 %v1110
      %1180 = vmatpush.bf16.msra.mxu0 %v1058
      %1181 = vmatpush.bf16.msra.mxu0 %v1056
      %1182 = vmatpush.bf16.msra.mxu0 %v1054
      %1183 = vmatpush.bf16.msra.mxu0 %v1052
      %1184 = vmatpush.bf16.msra.mxu0 %v1050
      %1185 = vmatmul.bf16.gmra.mxu0 %v1104
      %v1186 = vpop.f32.mrf.mxu0
      %v1187 = vadd.f32 %v1174, %v1186
      %v1188 = vpop.f32.mrf.mxu0
      %1189 = vdwg.mxu0
      %v1190 = vmax.f32 %v1148, 0.0
      %v1191 = vmax.f32 %v1187, 0.0
      %v1192 = vpack.c.bf16 %v1190, %v1190
      %v1193 = vpack.c.bf16 %v1191, %v1191
      %v1194 = vld [vmem:[#allocation10] sm:$0xf]
      %v1195 = vld [vmem:[#allocation10 + $0x4] sm:$0xf]
      %v1196 = vld [vmem:[#allocation10 + $0x8] sm:$0xf]
      %v1197 = vld [vmem:[#allocation10 + $0xc] sm:$0xf]
      %v1198 = vld [vmem:[#allocation10 + $0x10] sm:$0xf]
      %v1199 = vld [vmem:[#allocation10 + $0x14] sm:$0xf]
      %v1200 = vld [vmem:[#allocation10 + $0x18] sm:$0xf]
      %v1201 = vld [vmem:[#allocation10 + $0x1c] sm:$0xf]
      %v1202 = vld [vmem:[#allocation10 + $0x20] sm:$0xf]
      %v1203 = vld [vmem:[#allocation10 + $0x24] sm:$0xf]
      %v1204 = vld [vmem:[#allocation10 + $0x28] sm:$0xf]
      %v1205 = vld [vmem:[#allocation10 + $0x2c] sm:$0xf]
      %v1206 = vld [vmem:[#allocation10 + $0x30] sm:$0xf]
      %v1207 = vld [vmem:[#allocation10 + $0x34] sm:$0xf]
      %v1208 = vld [vmem:[#allocation10 + $0x38] sm:$0xf]
      %v1209 = vld [vmem:[#allocation10 + $0x3c] sm:$0xf]
      %v1210 = vld [vmem:[#allocation10 + $0x40] sm:$0xf]
      %v1211 = vld [vmem:[#allocation10 + $0x44] sm:$0xf]
      %v1212 = vld [vmem:[#allocation10 + $0x48] sm:$0xf]
      %v1213 = vld [vmem:[#allocation10 + $0x4c] sm:$0xf]
      %v1214 = vld [vmem:[#allocation10 + $0x50] sm:$0xf]
      %v1215 = vld [vmem:[#allocation10 + $0x54] sm:$0xf]
      %v1216 = vld [vmem:[#allocation10 + $0x58] sm:$0xf]
      %v1217 = vld [vmem:[#allocation10 + $0x5c] sm:$0xf]
      %v1218 = vld [vmem:[#allocation10 + $0x60] sm:$0xf]
      %v1219 = vld [vmem:[#allocation10 + $0x64] sm:$0xf]
      %v1220 = vld [vmem:[#allocation10 + $0x68] sm:$0xf]
      %v1221 = vld [vmem:[#allocation10 + $0x6c] sm:$0xf]
      %v1222 = vld [vmem:[#allocation10 + $0x70] sm:$0xf]
      %v1223 = vld [vmem:[#allocation10 + $0x74] sm:$0xf]
      %v1224 = vld [vmem:[#allocation10 + $0x78] sm:$0xf]
      %v1225 = vld [vmem:[#allocation10 + $0x7c] sm:$0xf]
      %v1226 = vld [vmem:[%s9] sm:$0x1]
      %v1228 = vperm.slane %v1226, 0
      %v1262 = vunpack.c.l.b16 %v1194
      %v1263 = vunpack.c.l.b16 %v1195
      %v1264 = vunpack.c.l.b16 %v1196
      %v1265 = vunpack.c.l.b16 %v1197
      %v1266 = vunpack.c.l.b16 %v1198
      %v1267 = vunpack.c.l.b16 %v1199
      %v1268 = vunpack.c.l.b16 %v1200
      %v1269 = vunpack.c.l.b16 %v1201
      %v1270 = vunpack.c.l.b16 %v1202
      %v1271 = vunpack.c.l.b16 %v1203
      %v1272 = vunpack.c.l.b16 %v1204
      %v1273 = vunpack.c.l.b16 %v1205
      %v1274 = vunpack.c.l.b16 %v1206
      %v1275 = vunpack.c.l.b16 %v1207
      %v1276 = vunpack.c.l.b16 %v1208
      %v1277 = vunpack.c.l.b16 %v1209
      %v1278 = vunpack.c.l.b16 %v1210
      %v1279 = vunpack.c.l.b16 %v1211
      %v1280 = vunpack.c.l.b16 %v1212
      %v1281 = vunpack.c.l.b16 %v1213
      %v1282 = vunpack.c.l.b16 %v1214
      %v1283 = vunpack.c.l.b16 %v1215
      %v1284 = vunpack.c.l.b16 %v1216
      %v1285 = vunpack.c.l.b16 %v1217
      %v1286 = vunpack.c.l.b16 %v1218
      %v1287 = vunpack.c.l.b16 %v1219
      %v1288 = vunpack.c.l.b16 %v1220
      %v1289 = vunpack.c.l.b16 %v1221
      %v1290 = vunpack.c.l.b16 %v1222
      %v1291 = vunpack.c.l.b16 %v1223
      %v1292 = vunpack.c.l.b16 %v1224
      %v1293 = vunpack.c.l.b16 %v1225
      %v1294 = vpack.c.b16 %v1263, %v1262
      %v1295 = vpack.c.b16 %v1265, %v1264
      %v1296 = vpack.c.b16 %v1267, %v1266
      %v1297 = vpack.c.b16 %v1269, %v1268
      %v1298 = vpack.c.b16 %v1271, %v1270
      %v1299 = vpack.c.b16 %v1273, %v1272
      %v1300 = vpack.c.b16 %v1275, %v1274
      %v1301 = vpack.c.b16 %v1277, %v1276
      %v1302 = vpack.c.b16 %v1279, %v1278
      %v1303 = vpack.c.b16 %v1281, %v1280
      %v1304 = vpack.c.b16 %v1283, %v1282
      %v1305 = vpack.c.b16 %v1285, %v1284
      %v1306 = vpack.c.b16 %v1287, %v1286
      %v1307 = vpack.c.b16 %v1289, %v1288
      %v1308 = vpack.c.b16 %v1291, %v1290
      %v1309 = vpack.c.b16 %v1293, %v1292
      %1326 = vmatpush.bf16.msra.mxu0 %v1301
      %1327 = vmatpush.bf16.msra.mxu0 %v1300
      %1328 = vmatpush.bf16.msra.mxu0 %v1299
      %1329 = vmatpush.bf16.msra.mxu0 %v1298
      %1330 = vmatpush.bf16.msra.mxu0 %v1297
      %1331 = vmatpush.bf16.msra.mxu0 %v1296
      %1332 = vmatpush.bf16.msra.mxu0 %v1295
      %1333 = vmatpush.bf16.msra.mxu0 %v1294
      %1334 = vmatmul.bf16.gmra.mxu0 %v1192
      %v1335 = vpop.f32.mrf.mxu0
      %v1336 = vadd.f32 %v1228, %v1335
      %v1337 = vpop.f32.mrf.mxu0
      %1338 = vdwg.mxu0
      %1339 = vmatpush.bf16.msra.mxu0 %v1309
      %1340 = vmatpush.bf16.msra.mxu0 %v1308
      %1341 = vmatpush.bf16.msra.mxu0 %v1307
      %1342 = vmatpush.bf16.msra.mxu0 %v1306
      %1343 = vmatpush.bf16.msra.mxu0 %v1305
      %1344 = vmatpush.bf16.msra.mxu0 %v1304
      %1345 = vmatpush.bf16.msra.mxu0 %v1303
      %1346 = vmatpush.bf16.msra.mxu0 %v1302
      %1347 = vmatmul.bf16.gmra.mxu0 %v1193
      %v1348 = vpop.f32.mrf.mxu0
      %v1349 = vadd.f32 %v1336, %v1348
      %v1350 = vpop.f32.mrf.mxu0
      %1351 = vdwg.mxu0
      %v1352 = vpack.c.bf16 %v776, %v776
      %v1353 = vpack.c.bf16 %v828, %v828
      %v1354 = vld [vmem:[#allocation12] sm:$0xff]
      %v1355 = vld [vmem:[#allocation12 + $0x8] sm:$0xff]
      %v1356 = vld [vmem:[#allocation12 + $0x10] sm:$0xff]
      %v1357 = vld [vmem:[#allocation12 + $0x18] sm:$0xff]
      %v1358 = vld [vmem:[#allocation12 + $0x20] sm:$0xff]
      %v1359 = vld [vmem:[#allocation12 + $0x28] sm:$0xff]
      %v1360 = vld [vmem:[#allocation12 + $0x30] sm:$0xff]
      %v1361 = vld [vmem:[#allocation12 + $0x38] sm:$0xff]
      %v1362 = vld [vmem:[#allocation12 + $0x40] sm:$0xff]
      %v1363 = vld [vmem:[#allocation12 + $0x48] sm:$0xff]
      %v1364 = vld [vmem:[#allocation12 + $0x50] sm:$0xff]
      %v1365 = vld [vmem:[#allocation12 + $0x58] sm:$0xff]
      %v1366 = vld [vmem:[#allocation12 + $0x60] sm:$0xff]
      %v1367 = vld [vmem:[#allocation12 + $0x68] sm:$0xff]
      %v1368 = vld [vmem:[#allocation12 + $0x70] sm:$0xff]
      %v1369 = vld [vmem:[#allocation12 + $0x78] sm:$0xff]
      %v1370 = vld [vmem:[#allocation12 + $0x80] sm:$0xff]
      %v1371 = vld [vmem:[#allocation12 + $0x88] sm:$0xff]
      %v1372 = vld [vmem:[#allocation12 + $0x90] sm:$0xff]
      %v1373 = vld [vmem:[#allocation12 + $0x98] sm:$0xff]
      %v1374 = vld [vmem:[#allocation12 + $0xa0] sm:$0xff]
      %v1375 = vld [vmem:[#allocation12 + $0xa8] sm:$0xff]
      %v1376 = vld [vmem:[#allocation12 + $0xb0] sm:$0xff]
      %v1377 = vld [vmem:[#allocation12 + $0xb8] sm:$0xff]
      %v1378 = vld [vmem:[#allocation12 + $0xc0] sm:$0xff]
      %v1379 = vld [vmem:[#allocation12 + $0xc8] sm:$0xff]
      %v1380 = vld [vmem:[#allocation12 + $0xd0] sm:$0xff]
      %v1381 = vld [vmem:[#allocation12 + $0xd8] sm:$0xff]
      %v1382 = vld [vmem:[#allocation12 + $0xe0] sm:$0xff]
      %v1383 = vld [vmem:[#allocation12 + $0xe8] sm:$0xff]
      %v1384 = vld [vmem:[#allocation12 + $0xf0] sm:$0xff]
      %v1385 = vld [vmem:[#allocation12 + $0xf8] sm:$0xff]
      %v1386 = vpack.c.bf16 %v1349, %v1349
      %v1387 = vld [vmem:[#allocation13] sm:$0xff]
      %v1388 = vld [vmem:[#allocation13 + $0x8] sm:$0xff]
      %v1389 = vld [vmem:[#allocation13 + $0x10] sm:$0xff]
      %v1390 = vld [vmem:[#allocation13 + $0x18] sm:$0xff]
      %v1391 = vld [vmem:[#allocation13 + $0x20] sm:$0xff]
      %v1392 = vld [vmem:[#allocation13 + $0x28] sm:$0xff]
      %v1393 = vld [vmem:[#allocation13 + $0x30] sm:$0xff]
      %v1394 = vld [vmem:[#allocation13 + $0x38] sm:$0xff]
      %v1395 = vld [vmem:[#allocation13 + $0x40] sm:$0xff]
      %v1396 = vld [vmem:[#allocation13 + $0x48] sm:$0xff]
      %v1397 = vld [vmem:[#allocation13 + $0x50] sm:$0xff]
      %v1398 = vld [vmem:[#allocation13 + $0x58] sm:$0xff]
      %v1399 = vld [vmem:[#allocation13 + $0x60] sm:$0xff]
      %v1400 = vld [vmem:[#allocation13 + $0x68] sm:$0xff]
      %v1401 = vld [vmem:[#allocation13 + $0x70] sm:$0xff]
      %v1402 = vld [vmem:[#allocation13 + $0x78] sm:$0xff]
      %v1419 = vunpack.c.l.b16 %v1387
      %v1420 = vunpack.c.h.b16 %v1387
      %v1421 = vunpack.c.l.b16 %v1388
      %v1422 = vunpack.c.h.b16 %v1388
      %v1423 = vunpack.c.l.b16 %v1389
      %v1424 = vunpack.c.h.b16 %v1389
      %v1425 = vunpack.c.l.b16 %v1390
      %v1426 = vunpack.c.h.b16 %v1390
      %v1427 = vunpack.c.l.b16 %v1391
      %v1428 = vunpack.c.h.b16 %v1391
      %v1429 = vunpack.c.l.b16 %v1392
      %v1430 = vunpack.c.h.b16 %v1392
      %v1431 = vunpack.c.l.b16 %v1393
      %v1432 = vunpack.c.h.b16 %v1393
      %v1433 = vunpack.c.l.b16 %v1394
      %v1434 = vunpack.c.h.b16 %v1394
      %v1435 = vunpack.c.l.b16 %v1395
      %v1436 = vunpack.c.h.b16 %v1395
      %v1437 = vunpack.c.l.b16 %v1396
      %v1438 = vunpack.c.h.b16 %v1396
      %v1439 = vunpack.c.l.b16 %v1397
      %v1440 = vunpack.c.h.b16 %v1397
      %v1441 = vunpack.c.l.b16 %v1398
      %v1442 = vunpack.c.h.b16 %v1398
      %v1443 = vunpack.c.l.b16 %v1399
      %v1444 = vunpack.c.h.b16 %v1399
      %v1445 = vunpack.c.l.b16 %v1400
      %v1446 = vunpack.c.h.b16 %v1400
      %v1447 = vunpack.c.l.b16 %v1401
      %v1448 = vunpack.c.h.b16 %v1401
      %v1449 = vunpack.c.l.b16 %v1402
      %v1450 = vunpack.c.h.b16 %v1402
      %v1451 = vpack.c.b16 %v1421, %v1419
      %v1452 = vpack.c.b16 %v1422, %v1420
      %v1453 = vpack.c.b16 %v1425, %v1423
      %v1454 = vpack.c.b16 %v1426, %v1424
      %v1455 = vpack.c.b16 %v1429, %v1427
      %v1456 = vpack.c.b16 %v1430, %v1428
      %v1457 = vpack.c.b16 %v1433, %v1431
      %v1458 = vpack.c.b16 %v1434, %v1432
      %v1459 = vpack.c.b16 %v1437, %v1435
      %v1460 = vpack.c.b16 %v1438, %v1436
      %v1461 = vpack.c.b16 %v1441, %v1439
      %v1462 = vpack.c.b16 %v1442, %v1440
      %v1463 = vpack.c.b16 %v1445, %v1443
      %v1464 = vpack.c.b16 %v1446, %v1444
      %v1465 = vpack.c.b16 %v1449, %v1447
      %v1466 = vpack.c.b16 %v1450, %v1448
      %1483 = vmatpush.bf16.msra.mxu0 %v1465
      %1484 = vmatpush.bf16.msra.mxu0 %v1463
      %1485 = vmatpush.bf16.msra.mxu0 %v1461
      %1486 = vmatpush.bf16.msra.mxu0 %v1459
      %1487 = vmatpush.bf16.msra.mxu0 %v1457
      %1488 = vmatpush.bf16.msra.mxu0 %v1455
      %1489 = vmatpush.bf16.msra.mxu0 %v1453
      %1490 = vmatpush.bf16.msra.mxu0 %v1451
      %1491 = vmatmul.bf16.gmra.mxu0 %v1386
      %v1492 = vpop.f32.mrf.mxu0
      %v1493 = vadd.f32 0.0, %v1492
      %v1494 = vpop.f32.mrf.mxu0
      %1495 = vdwg.mxu0
      %1496 = vmatpush.bf16.msra.mxu0 %v1466
      %1497 = vmatpush.bf16.msra.mxu0 %v1464
      %1498 = vmatpush.bf16.msra.mxu0 %v1462
      %1499 = vmatpush.bf16.msra.mxu0 %v1460
      %1500 = vmatpush.bf16.msra.mxu0 %v1458
      %1501 = vmatpush.bf16.msra.mxu0 %v1456
      %1502 = vmatpush.bf16.msra.mxu0 %v1454
      %1503 = vmatpush.bf16.msra.mxu0 %v1452
      %1504 = vmatmul.bf16.gmra.mxu0 %v1386
      %v1505 = vpop.f32.mrf.mxu0
      %v1506 = vadd.f32 0.0, %v1505
      %v1507 = vpop.f32.mrf.mxu0
      %1508 = vdwg.mxu0
      %v1541 = vunpack.c.l.b16 %v1354
      %v1542 = vunpack.c.h.b16 %v1354
      %v1543 = vunpack.c.l.b16 %v1355
      %v1544 = vunpack.c.h.b16 %v1355
      %v1545 = vunpack.c.l.b16 %v1356
      %v1546 = vunpack.c.h.b16 %v1356
      %v1547 = vunpack.c.l.b16 %v1357
      %v1548 = vunpack.c.h.b16 %v1357
      %v1549 = vunpack.c.l.b16 %v1358
      %v1550 = vunpack.c.h.b16 %v1358
      %v1551 = vunpack.c.l.b16 %v1359
      %v1552 = vunpack.c.h.b16 %v1359
      %v1553 = vunpack.c.l.b16 %v1360
      %v1554 = vunpack.c.h.b16 %v1360
      %v1555 = vunpack.c.l.b16 %v1361
      %v1556 = vunpack.c.h.b16 %v1361
      %v1557 = vunpack.c.l.b16 %v1362
      %v1558 = vunpack.c.h.b16 %v1362
      %v1559 = vunpack.c.l.b16 %v1363
      %v1560 = vunpack.c.h.b16 %v1363
      %v1561 = vunpack.c.l.b16 %v1364
      %v1562 = vunpack.c.h.b16 %v1364
      %v1563 = vunpack.c.l.b16 %v1365
      %v1564 = vunpack.c.h.b16 %v1365
      %v1565 = vunpack.c.l.b16 %v1366
      %v1566 = vunpack.c.h.b16 %v1366
      %v1567 = vunpack.c.l.b16 %v1367
      %v1568 = vunpack.c.h.b16 %v1367
      %v1569 = vunpack.c.l.b16 %v1368
      %v1570 = vunpack.c.h.b16 %v1368
      %v1571 = vunpack.c.l.b16 %v1369
      %v1572 = vunpack.c.h.b16 %v1369
      %v1573 = vunpack.c.l.b16 %v1370
      %v1574 = vunpack.c.h.b16 %v1370
      %v1575 = vunpack.c.l.b16 %v1371
      %v1576 = vunpack.c.h.b16 %v1371
      %v1577 = vunpack.c.l.b16 %v1372
      %v1578 = vunpack.c.h.b16 %v1372
      %v1579 = vunpack.c.l.b16 %v1373
      %v1580 = vunpack.c.h.b16 %v1373
      %v1581 = vunpack.c.l.b16 %v1374
      %v1582 = vunpack.c.h.b16 %v1374
      %v1583 = vunpack.c.l.b16 %v1375
      %v1584 = vunpack.c.h.b16 %v1375
      %v1585 = vunpack.c.l.b16 %v1376
      %v1586 = vunpack.c.h.b16 %v1376
      %v1587 = vunpack.c.l.b16 %v1377
      %v1588 = vunpack.c.h.b16 %v1377
      %v1589 = vunpack.c.l.b16 %v1378
      %v1590 = vunpack.c.h.b16 %v1378
      %v1591 = vunpack.c.l.b16 %v1379
      %v1592 = vunpack.c.h.b16 %v1379
      %v1593 = vunpack.c.l.b16 %v1380
      %v1594 = vunpack.c.h.b16 %v1380
      %v1595 = vunpack.c.l.b16 %v1381
      %v1596 = vunpack.c.h.b16 %v1381
      %v1597 = vunpack.c.l.b16 %v1382
      %v1598 = vunpack.c.h.b16 %v1382
      %v1599 = vunpack.c.l.b16 %v1383
      %v1600 = vunpack.c.h.b16 %v1383
      %v1601 = vunpack.c.l.b16 %v1384
      %v1602 = vunpack.c.h.b16 %v1384
      %v1603 = vunpack.c.l.b16 %v1385
      %v1604 = vunpack.c.h.b16 %v1385
      %v1605 = vpack.c.b16 %v1543, %v1541
      %v1606 = vpack.c.b16 %v1544, %v1542
      %v1607 = vpack.c.b16 %v1547, %v1545
      %v1608 = vpack.c.b16 %v1548, %v1546
      %v1609 = vpack.c.b16 %v1551, %v1549
      %v1610 = vpack.c.b16 %v1552, %v1550
      %v1611 = vpack.c.b16 %v1555, %v1553
      %v1612 = vpack.c.b16 %v1556, %v1554
      %v1613 = vpack.c.b16 %v1559, %v1557
      %v1614 = vpack.c.b16 %v1560, %v1558
      %v1615 = vpack.c.b16 %v1563, %v1561
      %v1616 = vpack.c.b16 %v1564, %v1562
      %v1617 = vpack.c.b16 %v1567, %v1565
      %v1618 = vpack.c.b16 %v1568, %v1566
      %v1619 = vpack.c.b16 %v1571, %v1569
      %v1620 = vpack.c.b16 %v1572, %v1570
      %v1621 = vpack.c.b16 %v1575, %v1573
      %v1622 = vpack.c.b16 %v1576, %v1574
      %v1623 = vpack.c.b16 %v1579, %v1577
      %v1624 = vpack.c.b16 %v1580, %v1578
      %v1625 = vpack.c.b16 %v1583, %v1581
      %v1626 = vpack.c.b16 %v1584, %v1582
      %v1627 = vpack.c.b16 %v1587, %v1585
      %v1628 = vpack.c.b16 %v1588, %v1586
      %v1629 = vpack.c.b16 %v1591, %v1589
      %v1630 = vpack.c.b16 %v1592, %v1590
      %v1631 = vpack.c.b16 %v1595, %v1593
      %v1632 = vpack.c.b16 %v1596, %v1594
      %v1633 = vpack.c.b16 %v1599, %v1597
      %v1634 = vpack.c.b16 %v1600, %v1598
      %v1635 = vpack.c.b16 %v1603, %v1601
      %v1636 = vpack.c.b16 %v1604, %v1602
      %1669 = vmatpush.bf16.msra.mxu0 %v1619
      %1670 = vmatpush.bf16.msra.mxu0 %v1617
      %1671 = vmatpush.bf16.msra.mxu0 %v1615
      %1672 = vmatpush.bf16.msra.mxu0 %v1613
      %1673 = vmatpush.bf16.msra.mxu0 %v1611
      %1674 = vmatpush.bf16.msra.mxu0 %v1609
      %1675 = vmatpush.bf16.msra.mxu0 %v1607
      %1676 = vmatpush.bf16.msra.mxu0 %v1605
      %1677 = vmatmul.bf16.gmra.mxu0 %v1352
      %v1678 = vpop.f32.mrf.mxu0
      %v1679 = vadd.f32 %v1493, %v1678
      %v1680 = vpop.f32.mrf.mxu0
      %1681 = vdwg.mxu0
      %1682 = vmatpush.bf16.msra.mxu0 %v1635
      %1683 = vmatpush.bf16.msra.mxu0 %v1633
      %1684 = vmatpush.bf16.msra.mxu0 %v1631
      %1685 = vmatpush.bf16.msra.mxu0 %v1629
      %1686 = vmatpush.bf16.msra.mxu0 %v1627
      %1687 = vmatpush.bf16.msra.mxu0 %v1625
      %1688 = vmatpush.bf16.msra.mxu0 %v1623
      %1689 = vmatpush.bf16.msra.mxu0 %v1621
      %1690 = vmatmul.bf16.gmra.mxu0 %v1353
      %v1691 = vpop.f32.mrf.mxu0
      %v1692 = vadd.f32 %v1679, %v1691
      %v1693 = vpop.f32.mrf.mxu0
      %1694 = vdwg.mxu0
      %1695 = vmatpush.bf16.msra.mxu0 %v1620
      %1696 = vmatpush.bf16.msra.mxu0 %v1618
      %1697 = vmatpush.bf16.msra.mxu0 %v1616
      %1698 = vmatpush.bf16.msra.mxu0 %v1614
      %1699 = vmatpush.bf16.msra.mxu0 %v1612
      %1700 = vmatpush.bf16.msra.mxu0 %v1610
      %1701 = vmatpush.bf16.msra.mxu0 %v1608
      %1702 = vmatpush.bf16.msra.mxu0 %v1606
      %1703 = vmatmul.bf16.gmra.mxu0 %v1352
      %v1704 = vpop.f32.mrf.mxu0
      %v1705 = vadd.f32 %v1506, %v1704
      %v1706 = vpop.f32.mrf.mxu0
      %1707 = vdwg.mxu0
      %1708 = vmatpush.bf16.msra.mxu0 %v1636
      %1709 = vmatpush.bf16.msra.mxu0 %v1634
      %1710 = vmatpush.bf16.msra.mxu0 %v1632
      %1711 = vmatpush.bf16.msra.mxu0 %v1630
      %1712 = vmatpush.bf16.msra.mxu0 %v1628
      %1713 = vmatpush.bf16.msra.mxu0 %v1626
      %1714 = vmatpush.bf16.msra.mxu0 %v1624
      %1715 = vmatpush.bf16.msra.mxu0 %v1622
      %1716 = vmatmul.bf16.gmra.mxu0 %v1353
      %v1717 = vpop.f32.mrf.mxu0
      %v1718 = vadd.f32 %v1705, %v1717
      %v1719 = vpop.f32.mrf.mxu0
      %1720 = vdwg.mxu0
      %v1721 = vld [vmem:[%s12] sm:$0x3]
      %v1723 = vperm.slane %v1721, 0
      %v1724 = vperm.slane %v1721, 1
      %v1727 = vadd.f32 %v1692, %v1723
      %v1728 = vadd.f32 %v1718, %v1724
      %v1729 = vmax.f32 %v1727, 0.0
      %v1730 = vmax.f32 %v1728, 0.0
      %v1731 = vpack.c.bf16 %v1729, %v1729
      %v1732 = vpack.c.bf16 %v1730, %v1730
      %v1733 = vld [vmem:[#allocation15] sm:$0xff]
      %v1734 = vld [vmem:[#allocation15 + $0x8] sm:$0xff]
      %v1735 = vld [vmem:[#allocation15 + $0x10] sm:$0xff]
      %v1736 = vld [vmem:[#allocation15 + $0x18] sm:$0xff]
      %v1737 = vld [vmem:[#allocation15 + $0x20] sm:$0xff]
      %v1738 = vld [vmem:[#allocation15 + $0x28] sm:$0xff]
      %v1739 = vld [vmem:[#allocation15 + $0x30] sm:$0xff]
      %v1740 = vld [vmem:[#allocation15 + $0x38] sm:$0xff]
      %v1741 = vld [vmem:[#allocation15 + $0x40] sm:$0xff]
      %v1742 = vld [vmem:[#allocation15 + $0x48] sm:$0xff]
      %v1743 = vld [vmem:[#allocation15 + $0x50] sm:$0xff]
      %v1744 = vld [vmem:[#allocation15 + $0x58] sm:$0xff]
      %v1745 = vld [vmem:[#allocation15 + $0x60] sm:$0xff]
      %v1746 = vld [vmem:[#allocation15 + $0x68] sm:$0xff]
      %v1747 = vld [vmem:[#allocation15 + $0x70] sm:$0xff]
      %v1748 = vld [vmem:[#allocation15 + $0x78] sm:$0xff]
      %v1749 = vld [vmem:[#allocation15 + $0x80] sm:$0xff]
      %v1750 = vld [vmem:[#allocation15 + $0x88] sm:$0xff]
      %v1751 = vld [vmem:[#allocation15 + $0x90] sm:$0xff]
      %v1752 = vld [vmem:[#allocation15 + $0x98] sm:$0xff]
      %v1753 = vld [vmem:[#allocation15 + $0xa0] sm:$0xff]
      %v1754 = vld [vmem:[#allocation15 + $0xa8] sm:$0xff]
      %v1755 = vld [vmem:[#allocation15 + $0xb0] sm:$0xff]
      %v1756 = vld [vmem:[#allocation15 + $0xb8] sm:$0xff]
      %v1757 = vld [vmem:[#allocation15 + $0xc0] sm:$0xff]
      %v1758 = vld [vmem:[#allocation15 + $0xc8] sm:$0xff]
      %v1759 = vld [vmem:[#allocation15 + $0xd0] sm:$0xff]
      %v1760 = vld [vmem:[#allocation15 + $0xd8] sm:$0xff]
      %v1761 = vld [vmem:[#allocation15 + $0xe0] sm:$0xff]
      %v1762 = vld [vmem:[#allocation15 + $0xe8] sm:$0xff]
      %v1763 = vld [vmem:[#allocation15 + $0xf0] sm:$0xff]
      %v1764 = vld [vmem:[#allocation15 + $0xf8] sm:$0xff]
      %v1765 = vld [vmem:[%s14] sm:$0x3]
      %v1767 = vperm.slane %v1765, 0
      %v1768 = vperm.slane %v1765, 1
      %v1803 = vunpack.c.l.b16 %v1733
      %v1804 = vunpack.c.h.b16 %v1733
      %v1805 = vunpack.c.l.b16 %v1734
      %v1806 = vunpack.c.h.b16 %v1734
      %v1807 = vunpack.c.l.b16 %v1735
      %v1808 = vunpack.c.h.b16 %v1735
      %v1809 = vunpack.c.l.b16 %v1736
      %v1810 = vunpack.c.h.b16 %v1736
      %v1811 = vunpack.c.l.b16 %v1737
      %v1812 = vunpack.c.h.b16 %v1737
      %v1813 = vunpack.c.l.b16 %v1738
      %v1814 = vunpack.c.h.b16 %v1738
      %v1815 = vunpack.c.l.b16 %v1739
      %v1816 = vunpack.c.h.b16 %v1739
      %v1817 = vunpack.c.l.b16 %v1740
      %v1818 = vunpack.c.h.b16 %v1740
      %v1819 = vunpack.c.l.b16 %v1741
      %v1820 = vunpack.c.h.b16 %v1741
      %v1821 = vunpack.c.l.b16 %v1742
      %v1822 = vunpack.c.h.b16 %v1742
      %v1823 = vunpack.c.l.b16 %v1743
      %v1824 = vunpack.c.h.b16 %v1743
      %v1825 = vunpack.c.l.b16 %v1744
      %v1826 = vunpack.c.h.b16 %v1744
      %v1827 = vunpack.c.l.b16 %v1745
      %v1828 = vunpack.c.h.b16 %v1745
      %v1829 = vunpack.c.l.b16 %v1746
      %v1830 = vunpack.c.h.b16 %v1746
      %v1831 = vunpack.c.l.b16 %v1747
      %v1832 = vunpack.c.h.b16 %v1747
      %v1833 = vunpack.c.l.b16 %v1748
      %v1834 = vunpack.c.h.b16 %v1748
      %v1835 = vunpack.c.l.b16 %v1749
      %v1836 = vunpack.c.h.b16 %v1749
      %v1837 = vunpack.c.l.b16 %v1750
      %v1838 = vunpack.c.h.b16 %v1750
      %v1839 = vunpack.c.l.b16 %v1751
      %v1840 = vunpack.c.h.b16 %v1751
      %v1841 = vunpack.c.l.b16 %v1752
      %v1842 = vunpack.c.h.b16 %v1752
      %v1843 = vunpack.c.l.b16 %v1753
      %v1844 = vunpack.c.h.b16 %v1753
      %v1845 = vunpack.c.l.b16 %v1754
      %v1846 = vunpack.c.h.b16 %v1754
      %v1847 = vunpack.c.l.b16 %v1755
      %v1848 = vunpack.c.h.b16 %v1755
      %v1849 = vunpack.c.l.b16 %v1756
      %v1850 = vunpack.c.h.b16 %v1756
      %v1851 = vunpack.c.l.b16 %v1757
      %v1852 = vunpack.c.h.b16 %v1757
      %v1853 = vunpack.c.l.b16 %v1758
      %v1854 = vunpack.c.h.b16 %v1758
      %v1855 = vunpack.c.l.b16 %v1759
      %v1856 = vunpack.c.h.b16 %v1759
      %v1857 = vunpack.c.l.b16 %v1760
      %v1858 = vunpack.c.h.b16 %v1760
      %v1859 = vunpack.c.l.b16 %v1761
      %v1860 = vunpack.c.h.b16 %v1761
      %v1861 = vunpack.c.l.b16 %v1762
      %v1862 = vunpack.c.h.b16 %v1762
      %v1863 = vunpack.c.l.b16 %v1763
      %v1864 = vunpack.c.h.b16 %v1763
      %v1865 = vunpack.c.l.b16 %v1764
      %v1866 = vunpack.c.h.b16 %v1764
      %v1867 = vpack.c.b16 %v1805, %v1803
      %v1868 = vpack.c.b16 %v1806, %v1804
      %v1869 = vpack.c.b16 %v1809, %v1807
      %v1870 = vpack.c.b16 %v1810, %v1808
      %v1871 = vpack.c.b16 %v1813, %v1811
      %v1872 = vpack.c.b16 %v1814, %v1812
      %v1873 = vpack.c.b16 %v1817, %v1815
      %v1874 = vpack.c.b16 %v1818, %v1816
      %v1875 = vpack.c.b16 %v1821, %v1819
      %v1876 = vpack.c.b16 %v1822, %v1820
      %v1877 = vpack.c.b16 %v1825, %v1823
      %v1878 = vpack.c.b16 %v1826, %v1824
      %v1879 = vpack.c.b16 %v1829, %v1827
      %v1880 = vpack.c.b16 %v1830, %v1828
      %v1881 = vpack.c.b16 %v1833, %v1831
      %v1882 = vpack.c.b16 %v1834, %v1832
      %v1883 = vpack.c.b16 %v1837, %v1835
      %v1884 = vpack.c.b16 %v1838, %v1836
      %v1885 = vpack.c.b16 %v1841, %v1839
      %v1886 = vpack.c.b16 %v1842, %v1840
      %v1887 = vpack.c.b16 %v1845, %v1843
      %v1888 = vpack.c.b16 %v1846, %v1844
      %v1889 = vpack.c.b16 %v1849, %v1847
      %v1890 = vpack.c.b16 %v1850, %v1848
      %v1891 = vpack.c.b16 %v1853, %v1851
      %v1892 = vpack.c.b16 %v1854, %v1852
      %v1893 = vpack.c.b16 %v1857, %v1855
      %v1894 = vpack.c.b16 %v1858, %v1856
      %v1895 = vpack.c.b16 %v1861, %v1859
      %v1896 = vpack.c.b16 %v1862, %v1860
      %v1897 = vpack.c.b16 %v1865, %v1863
      %v1898 = vpack.c.b16 %v1866, %v1864
      %1931 = vmatpush.bf16.msra.mxu0 %v1881
      %1932 = vmatpush.bf16.msra.mxu0 %v1879
      %1933 = vmatpush.bf16.msra.mxu0 %v1877
      %1934 = vmatpush.bf16.msra.mxu0 %v1875
      %1935 = vmatpush.bf16.msra.mxu0 %v1873
      %1936 = vmatpush.bf16.msra.mxu0 %v1871
      %1937 = vmatpush.bf16.msra.mxu0 %v1869
      %1938 = vmatpush.bf16.msra.mxu0 %v1867
      %1939 = vmatmul.bf16.gmra.mxu0 %v1731
      %v1940 = vpop.f32.mrf.mxu0
      %v1941 = vadd.f32 %v1767, %v1940
      %v1942 = vpop.f32.mrf.mxu0
      %1943 = vdwg.mxu0
      %1944 = vmatpush.bf16.msra.mxu0 %v1897
      %1945 = vmatpush.bf16.msra.mxu0 %v1895
      %1946 = vmatpush.bf16.msra.mxu0 %v1893
      %1947 = vmatpush.bf16.msra.mxu0 %v1891
      %1948 = vmatpush.bf16.msra.mxu0 %v1889
      %1949 = vmatpush.bf16.msra.mxu0 %v1887
      %1950 = vmatpush.bf16.msra.mxu0 %v1885
      %1951 = vmatpush.bf16.msra.mxu0 %v1883
      %1952 = vmatmul.bf16.gmra.mxu0 %v1732
      %v1953 = vpop.f32.mrf.mxu0
      %v1954 = vadd.f32 %v1941, %v1953
      %v1955 = vpop.f32.mrf.mxu0
      %1956 = vdwg.mxu0
      %1957 = vmatpush.bf16.msra.mxu0 %v1882
      %1958 = vmatpush.bf16.msra.mxu0 %v1880
      %1959 = vmatpush.bf16.msra.mxu0 %v1878
      %1960 = vmatpush.bf16.msra.mxu0 %v1876
      %1961 = vmatpush.bf16.msra.mxu0 %v1874
      %1962 = vmatpush.bf16.msra.mxu0 %v1872
      %1963 = vmatpush.bf16.msra.mxu0 %v1870
      %1964 = vmatpush.bf16.msra.mxu0 %v1868
      %1965 = vmatmul.bf16.gmra.mxu0 %v1731
      %v1966 = vpop.f32.mrf.mxu0
      %v1967 = vadd.f32 %v1768, %v1966
      %v1968 = vpop.f32.mrf.mxu0
      %1969 = vdwg.mxu0
      %1970 = vmatpush.bf16.msra.mxu0 %v1898
      %1971 = vmatpush.bf16.msra.mxu0 %v1896
      %1972 = vmatpush.bf16.msra.mxu0 %v1894
      %1973 = vmatpush.bf16.msra.mxu0 %v1892
      %1974 = vmatpush.bf16.msra.mxu0 %v1890
      %1975 = vmatpush.bf16.msra.mxu0 %v1888
      %1976 = vmatpush.bf16.msra.mxu0 %v1886
      %1977 = vmatpush.bf16.msra.mxu0 %v1884
      %1978 = vmatmul.bf16.gmra.mxu0 %v1732
      %v1979 = vpop.f32.mrf.mxu0
      %v1980 = vadd.f32 %v1967, %v1979
      %v1981 = vpop.f32.mrf.mxu0
      %1982 = vdwg.mxu0
      %v1983 = vmax.f32 %v1954, 0.0
      %v1984 = vmax.f32 %v1980, 0.0
      %v1985 = vpack.c.bf16 %v1983, %v1983
      %v1986 = vpack.c.bf16 %v1984, %v1984
      %v1987 = vld [vmem:[#allocation16] sm:$0xf]
      %v1988 = vld [vmem:[#allocation16 + $0x4] sm:$0xf]
      %v1989 = vld [vmem:[#allocation16 + $0x8] sm:$0xf]
      %v1990 = vld [vmem:[#allocation16 + $0xc] sm:$0xf]
      %v1991 = vld [vmem:[#allocation16 + $0x10] sm:$0xf]
      %v1992 = vld [vmem:[#allocation16 + $0x14] sm:$0xf]
      %v1993 = vld [vmem:[#allocation16 + $0x18] sm:$0xf]
      %v1994 = vld [vmem:[#allocation16 + $0x1c] sm:$0xf]
      %v1995 = vld [vmem:[#allocation16 + $0x20] sm:$0xf]
      %v1996 = vld [vmem:[#allocation16 + $0x24] sm:$0xf]
      %v1997 = vld [vmem:[#allocation16 + $0x28] sm:$0xf]
      %v1998 = vld [vmem:[#allocation16 + $0x2c] sm:$0xf]
      %v1999 = vld [vmem:[#allocation16 + $0x30] sm:$0xf]
      %v2000 = vld [vmem:[#allocation16 + $0x34] sm:$0xf]
      %v2001 = vld [vmem:[#allocation16 + $0x38] sm:$0xf]
      %v2002 = vld [vmem:[#allocation16 + $0x3c] sm:$0xf]
      %v2003 = vld [vmem:[#allocation16 + $0x40] sm:$0xf]
      %v2004 = vld [vmem:[#allocation16 + $0x44] sm:$0xf]
      %v2005 = vld [vmem:[#allocation16 + $0x48] sm:$0xf]
      %v2006 = vld [vmem:[#allocation16 + $0x4c] sm:$0xf]
      %v2007 = vld [vmem:[#allocation16 + $0x50] sm:$0xf]
      %v2008 = vld [vmem:[#allocation16 + $0x54] sm:$0xf]
      %v2009 = vld [vmem:[#allocation16 + $0x58] sm:$0xf]
      %v2010 = vld [vmem:[#allocation16 + $0x5c] sm:$0xf]
      %v2011 = vld [vmem:[#allocation16 + $0x60] sm:$0xf]
      %v2012 = vld [vmem:[#allocation16 + $0x64] sm:$0xf]
      %v2013 = vld [vmem:[#allocation16 + $0x68] sm:$0xf]
      %v2014 = vld [vmem:[#allocation16 + $0x6c] sm:$0xf]
      %v2015 = vld [vmem:[#allocation16 + $0x70] sm:$0xf]
      %v2016 = vld [vmem:[#allocation16 + $0x74] sm:$0xf]
      %v2017 = vld [vmem:[#allocation16 + $0x78] sm:$0xf]
      %v2018 = vld [vmem:[#allocation16 + $0x7c] sm:$0xf]
      %s2019 = sld [smem:[#allocation3]]
      %v2020 = vstv %s2019
      %v2053 = vunpack.c.l.b16 %v1987
      %v2054 = vunpack.c.l.b16 %v1988
      %v2055 = vunpack.c.l.b16 %v1989
      %v2056 = vunpack.c.l.b16 %v1990
      %v2057 = vunpack.c.l.b16 %v1991
      %v2058 = vunpack.c.l.b16 %v1992
      %v2059 = vunpack.c.l.b16 %v1993
      %v2060 = vunpack.c.l.b16 %v1994
      %v2061 = vunpack.c.l.b16 %v1995
      %v2062 = vunpack.c.l.b16 %v1996
      %v2063 = vunpack.c.l.b16 %v1997
      %v2064 = vunpack.c.l.b16 %v1998
      %v2065 = vunpack.c.l.b16 %v1999
      %v2066 = vunpack.c.l.b16 %v2000
      %v2067 = vunpack.c.l.b16 %v2001
      %v2068 = vunpack.c.l.b16 %v2002
      %v2069 = vunpack.c.l.b16 %v2003
      %v2070 = vunpack.c.l.b16 %v2004
      %v2071 = vunpack.c.l.b16 %v2005
      %v2072 = vunpack.c.l.b16 %v2006
      %v2073 = vunpack.c.l.b16 %v2007
      %v2074 = vunpack.c.l.b16 %v2008
      %v2075 = vunpack.c.l.b16 %v2009
      %v2076 = vunpack.c.l.b16 %v2010
      %v2077 = vunpack.c.l.b16 %v2011
      %v2078 = vunpack.c.l.b16 %v2012
      %v2079 = vunpack.c.l.b16 %v2013
      %v2080 = vunpack.c.l.b16 %v2014
      %v2081 = vunpack.c.l.b16 %v2015
      %v2082 = vunpack.c.l.b16 %v2016
      %v2083 = vunpack.c.l.b16 %v2017
      %v2084 = vunpack.c.l.b16 %v2018
      %v2085 = vpack.c.b16 %v2054, %v2053
      %v2086 = vpack.c.b16 %v2056, %v2055
      %v2087 = vpack.c.b16 %v2058, %v2057
      %v2088 = vpack.c.b16 %v2060, %v2059
      %v2089 = vpack.c.b16 %v2062, %v2061
      %v2090 = vpack.c.b16 %v2064, %v2063
      %v2091 = vpack.c.b16 %v2066, %v2065
      %v2092 = vpack.c.b16 %v2068, %v2067
      %v2093 = vpack.c.b16 %v2070, %v2069
      %v2094 = vpack.c.b16 %v2072, %v2071
      %v2095 = vpack.c.b16 %v2074, %v2073
      %v2096 = vpack.c.b16 %v2076, %v2075
      %v2097 = vpack.c.b16 %v2078, %v2077
      %v2098 = vpack.c.b16 %v2080, %v2079
      %v2099 = vpack.c.b16 %v2082, %v2081
      %v2100 = vpack.c.b16 %v2084, %v2083
      %2117 = vmatpush.bf16.msra.mxu0 %v2092
      %2118 = vmatpush.bf16.msra.mxu0 %v2091
      %2119 = vmatpush.bf16.msra.mxu0 %v2090
      %2120 = vmatpush.bf16.msra.mxu0 %v2089
      %2121 = vmatpush.bf16.msra.mxu0 %v2088
      %2122 = vmatpush.bf16.msra.mxu0 %v2087
      %2123 = vmatpush.bf16.msra.mxu0 %v2086
      %2124 = vmatpush.bf16.msra.mxu0 %v2085
      %2125 = vmatmul.bf16.gmra.mxu0 %v1985
      %v2126 = vpop.f32.mrf.mxu0
      %v2127 = vadd.f32 %v2020, %v2126
      %v2128 = vpop.f32.mrf.mxu0
      %2129 = vdwg.mxu0
      %2130 = vmatpush.bf16.msra.mxu0 %v2100
      %2131 = vmatpush.bf16.msra.mxu0 %v2099
      %2132 = vmatpush.bf16.msra.mxu0 %v2098
      %2133 = vmatpush.bf16.msra.mxu0 %v2097
      %2134 = vmatpush.bf16.msra.mxu0 %v2096
      %2135 = vmatpush.bf16.msra.mxu0 %v2095
      %2136 = vmatpush.bf16.msra.mxu0 %v2094
      %2137 = vmatpush.bf16.msra.mxu0 %v2093
      %2138 = vmatmul.bf16.gmra.mxu0 %v1986
      %v2139 = vpop.f32.mrf.mxu0
      %v2140 = vadd.f32 %v2127, %v2139
      %v2141 = vpop.f32.mrf.mxu0
      %2142 = vdwg.mxu0
      %2143 = vst [vmem:[#allocation18] sm:$0x3] %v2140
    $region109: #{tpu_custom_call.1} parent=1 // pred_fallthru
      _
    // Predicated region
    $region110: #{tpu_custom_call.1} parent=1 // pred_check
      _
    $region111: #{tpu_custom_call.1} parent=1 // pred_check_branch
      %2145 = sbr.rel (0) target = $region113
    $region112: #{tpu_custom_call.1} parent=1 // pred_region
      %2147 = vsyncadd [#allocation6], 0
      %s2149 = sshll.u32 [#allocation18], 4
      %s2150 = int_to_ptr.vmem [resolvable:$true] %s2149
      %s2151 = sshll.u32 %s17, 4
      %s2152 = int_to_ptr.hbm [resolvable:$true] %s2151
      %2154 = dma.vmem_to_hbm [thread:$0]  %s2150, 32, %s2152, [#allocation6]
    $region113: #{tpu_custom_call.1} parent=1 // pred_fallthru
      _
    // Predicated region
    $region114: #{tpu_custom_call.1} parent=1 // pred_check
      _
    $region115: #{tpu_custom_call.1} parent=1 // pred_check_branch
      %2156 = sbr.rel (0) target = $region117
    $region116: #{tpu_custom_call.1} parent=1 // pred_region
      %2158 = dma.done [#allocation6], 32
    $region117: #{tpu_custom_call.1} parent=1 // pred_fallthru
      _
    %2159 = vsyncpa [#allocation5], 1
    %2160 = vsyncpa [#allocation8], 1
    %2161 = vsyncpa [#allocation11], 1
    %2162 = vsyncpa [#allocation14], 1
    %2163 = vsyncpa [#allocation17], 1
    %2164 = vsyncpa [#allocation6], 1

</llo_original>
